<compile_context>
chip_gen: v7x
topology: tpu7x:2x2x1
jax: 0.10.0
libtpu: 0.0.40
codegen_flags: <defaults>
</compile_context>

<pallas_src>
import jax
import jax.numpy as jnp
import numpy as np
from jax import lax
from jax.experimental import pallas as pl
from jax.experimental.pallas import tpu as pltpu


def _round_up(n, m):
    return ((n + m - 1) // m) * m


# -----------------------------------------------------------------------------
# Fused Pallas kernel (factory closes over static shapes)
# -----------------------------------------------------------------------------
def make_fused_kernel(num_layers, T, B, H, in_rows0, out_size, use_fc2_dot):
    def kernel(*refs):
        # inputs: x, bias_slab, head_w, head_c, [fc2_w], w_slab_0..w_slab_{L-1}
        # then:   out_ref, seq_scratch
        x_ref, b_ref, hw_ref, hc_ref = refs[:4]
        idx = 4
        if use_fc2_dot:
            fc2w_ref = refs[idx]
            idx += 1
        wslab_refs = refs[idx:idx + num_layers]
        idx += num_layers
        out_ref = refs[idx]
        seq_ref = refs[idx + 1]

        def cell(gates, c):
            # Full-width transcendentals over all 4H gate lanes (one sigmoid +
            # one tanh EUP issue per step), then static gate slices.
            # Gate order i, f, g, o (PyTorch nn.LSTM convention).
            sg = jax.nn.sigmoid(gates)
            th = jnp.tanh(gates)
            i_g = sg[:, 0 * H:1 * H]
            f_g = sg[:, 1 * H:2 * H]
            g_g = th[:, 2 * H:3 * H]
            o_g = sg[:, 3 * H:4 * H]
            c_new = f_g * c + i_g * g_g
            h_new = o_g * jnp.tanh(c_new)
            return h_new, c_new

        seq = x_ref[...]                                    # bf16 (T*B, in_rows0)
        h = None
        for layer in range(num_layers):
            in_rows = in_rows0 if layer == 0 else H
            wslab = wslab_refs[layer]
            w_ih = wslab[0:in_rows, :]                      # bf16 (in_rows, 4H)
            w_hh = wslab[in_rows:in_rows + H, :]            # bf16 (H, 4H)
            b = b_ref[layer:layer + 1, :]                   # f32  (1, 4H)

            # Hoisted input projection: one big matmul off the serial path.
            gx = jnp.dot(seq, w_ih,
                         preferred_element_type=jnp.float32) + b   # (T*B, 4H) f32

            h = jnp.zeros((B, H), jnp.float32)
            c = jnp.zeros((B, H), jnp.float32)
            last = (layer + 1 == num_layers)
            for t in range(T):
                # TODO(synk): pltpu.matmul_push_rhs/acc_lhs/pop would keep W_hh
                # resident in the MXU instead of re-streaming it each step.
                gates = gx[t * B:(t + 1) * B, :] + jnp.dot(
                    h.astype(jnp.bfloat16), w_hh,
                    preferred_element_type=jnp.float32)
                h, c = cell(gates, c)
                if not last:
                    # Sublane-aligned (static multiple-of-8 row offset) write of
                    # the hidden sequence into VMEM scratch -- no concatenates.
                    seq_ref[t * B:(t + 1) * B, :] = h

            if not last:
                seq = seq_ref[...].astype(jnp.bfloat16)     # (T*B, H)
            # TODO(synk): nn.LSTM inter-layer dropout(p=0.5) is train-mode only;
            # inference-mode identity here.

        # Head on the last timestep's hidden state of the last layer.
        # fc1 output is padded to a full 128-lane width so every op is lane-dense.
        z = jnp.dot(h.astype(jnp.bfloat16), hw_ref[...],
                    preferred_element_type=jnp.float32) + hc_ref[0:1, :]
        z = jnp.maximum(z, 0.0)                             # (B, F1P) f32
        # TODO(synk): self.dropout after fc1 is stochastic in train mode;
        # inference-mode identity here.
        if use_fc2_dot:
            out_ref[...] = (jnp.dot(z.astype(jnp.bfloat16), fc2w_ref[...],
                                    preferred_element_type=jnp.float32)
                            + hc_ref[1:2, 0:out_size])
        else:
            # out_size == 1: keep fc2 off the MXU -- VPU/XLU lane reduction
            # instead of an N=1 matmul.
            w2 = hc_ref[2:3, :]                             # (1, F1P), zero-padded
            red = jnp.sum(z * w2, axis=-1, keepdims=True)   # (B, 1)
            out_ref[...] = red + hc_ref[1:2, 0:1]

    return kernel


# -----------------------------------------------------------------------------
# Wrapper: packs/pads operands (XLA-side layout plumbing) and calls the kernel
# -----------------------------------------------------------------------------
def _cost_estimate(B, T, I, H, num_layers, F1, out_size, total_bytes):
    flops = 0
    in_dim = I
    for _ in range(num_layers):
        flops += 2 * T * B * in_dim * 4 * H       # hoisted input projection
        flops += 2 * T * B * H * 4 * H            # recurrent matmuls
        flops += 10 * T * B * H                   # cell elementwise (approx)
        in_dim = H
    flops += 2 * B * H * F1 + 2 * B * F1 * out_size
    transcendentals = 3 * T * B * 4 * H * num_layers   # full-width sigmoid+tanh+tanh(c)
    return pl.CostEstimate(flops=int(flops),
                           transcendentals=int(transcendentals),
                           bytes_accessed=int(total_bytes))


def sales_lstm_forward(x_bti, params):
    """Full forward.  x_bti: (B, T, input_size) (PyTorch batch_first layout)."""
    x_bti = x_bti.astype(jnp.float32)
    B, T, I = x_bti.shape
    lstm = params["lstm"]
    num_layers = len(lstm)
    H = lstm[0]["w_hh"].shape[1]
    G = 4 * H
    F1 = params["fc1_w"].shape[0]                 # 64
    out_size = params["fc2_w"].shape[0]

    B_pad = _round_up(max(B, 8), 8)               # full sublane group(s)
    in_rows0 = _round_up(max(I, 16), 16)          # bf16 sublane-tile-aligned W_ih rows
    F1P = _round_up(max(F1, 128), 128)            # lane-dense fc1 width

    # --- input: time-major, batch- and feature-padded, flattened, bf16 -------
    x_t = jnp.transpose(x_bti, (1, 0, 2))                     # (T, B, I)
    x_t = jnp.pad(x_t, ((0, 0), (0, B_pad - B), (0, in_rows0 - I)))
    x_flat = x_t.reshape(T * B_pad, in_rows0).astype(jnp.bfloat16)

    # --- per-layer weight slabs (bf16) + one fused-bias slab (f32) -----------
    w_slabs = []
    biases = []
    for layer, p in enumerate(lstm):
        in_dim = I if layer == 0 else H
        in_rows = in_rows0 if layer == 0 else H
        w_ih = jnp.zeros((in_rows, G), jnp.float32).at[:in_dim, :].set(p["w_ih"].T)
        w_hh = p["w_hh"].T                                     # (H, 4H)
        w_slabs.append(jnp.concatenate([w_ih, w_hh], axis=0).astype(jnp.bfloat16))
        biases.append(p["b_ih"] + p["b_hh"])
    b_rows = _round_up(max(num_layers, 8), 8)
    b_slab = jnp.zeros((b_rows, G), jnp.float32).at[:num_layers, :].set(
        jnp.stack(biases))

    # --- head: fc1 weight lane-padded; fc1_b / fc2_b / fc2_w in one f32 slab --
    head_w = jnp.zeros((H, F1P), jnp.float32).at[:, :F1].set(params["fc1_w"].T)
    head_w = head_w.astype(jnp.bfloat16)
    use_fc2_dot = (out_size != 1)
    head_c = jnp.zeros((8, F1P), jnp.float32)
    head_c = head_c.at[0, :F1].set(params["fc1_b"])
    head_c = head_c.at[1, :out_size].set(params["fc2_b"])
    if not use_fc2_dot:
        head_c = head_c.at[2, :F1].set(params["fc2_w"][0])

    operands = [x_flat, b_slab, head_w, head_c]
    if use_fc2_dot:
        fc2w = jnp.zeros((F1P, out_size), jnp.float32).at[:F1, :].set(
            params["fc2_w"].T)
        operands.append(fc2w.astype(jnp.bfloat16))
    operands += w_slabs

    total_bytes = sum(int(np.prod(o.shape)) * o.dtype.itemsize for o in operands)
    total_bytes += B_pad * out_size * 4
    ce = _cost_estimate(B_pad, T, I, H, num_layers, F1, out_size, total_bytes)

    kernel = make_fused_kernel(num_layers, T, B_pad, H, in_rows0, out_size,
                               use_fc2_dot)
    # No grid: single invocation, all operands DMA'd to VMEM once.  Footprint
    # <1 MiB, fine on v5e/v6e (128 MiB) and v7x (64 MiB).  At larger batch a
    # leading "parallel" grid axis would shard across v7x's two TensorCores.
    out_pad = pl.pallas_call(
        kernel,
        out_shape=jax.ShapeDtypeStruct((B_pad, out_size), jnp.float32),
        scratch_shapes=[pltpu.VMEM((T * B_pad, H), jnp.float32)],
        cost_estimate=ce,
    )(*operands)
    return out_pad[:B]


# -----------------------------------------------------------------------------
# Deterministic PyTorch-style parameter init (native nn.LSTM / nn.Linear layout)
# -----------------------------------------------------------------------------
def init_params(key, input_size, hidden_size, num_layers, output_size):
    k = 1.0 / np.sqrt(hidden_size)
    params = {"lstm": []}
    for layer in range(num_layers):
        in_dim = input_size if layer == 0 else hidden_size
        key, k1, k2, k3, k4 = jax.random.split(key, 5)
        params["lstm"].append(dict(
            w_ih=jax.random.uniform(k1, (4 * hidden_size, in_dim), jnp.float32, -k, k),
            w_hh=jax.random.uniform(k2, (4 * hidden_size, hidden_size), jnp.float32, -k, k),
            b_ih=jax.random.uniform(k3, (4 * hidden_size,), jnp.float32, -k, k),
            b_hh=jax.random.uniform(k4, (4 * hidden_size,), jnp.float32, -k, k)))
    kf1 = 1.0 / np.sqrt(hidden_size)
    kf2 = 1.0 / np.sqrt(64)
    key, a, b_, c, d = jax.random.split(key, 5)
    params["fc1_w"] = jax.random.uniform(a, (64, hidden_size), jnp.float32, -kf1, kf1)
    params["fc1_b"] = jax.random.uniform(b_, (64,), jnp.float32, -kf1, kf1)
    params["fc2_w"] = jax.random.uniform(c, (output_size, 64), jnp.float32, -kf2, kf2)
    params["fc2_b"] = jax.random.uniform(d, (output_size,), jnp.float32, -kf2, kf2)
    return params


# -----------------------------------------------------------------------------
# Pure-JAX f32 reference (PyTorch semantics) for verification
# -----------------------------------------------------------------------------
def reference_forward(x_bti, params):
    B = x_bti.shape[0]
    h_seq = jnp.transpose(x_bti, (1, 0, 2)).astype(jnp.float32)   # (T, B, I)
    for p in params["lstm"]:
        w_ih, w_hh = p["w_ih"], p["w_hh"]
        b = p["b_ih"] + p["b_hh"]
        H = w_hh.shape[1]

        def step(carry, x_t, w_ih=w_ih, w_hh=w_hh, b=b, H=H):
            h, c = carry
            gates = x_t @ w_ih.T + h @ w_hh.T + b
            i_g = jax.nn.sigmoid(gates[:, 0 * H:1 * H])
            f_g = jax.nn.sigmoid(gates[:, 1 * H:2 * H])
            g_g = jnp.tanh(gates[:, 2 * H:3 * H])
            o_g = jax.nn.sigmoid(gates[:, 3 * H:4 * H])
            c_new = f_g * c + i_g * g_g
            h_new = o_g * jnp.tanh(c_new)
            return (h_new, c_new), h_new

        h0 = jnp.zeros((B, H), jnp.float32)
        c0 = jnp.zeros((B, H), jnp.float32)
        (_, _), h_seq = lax.scan(step, (h0, c0), h_seq)
    h_last = h_seq[-1]
    z = jnp.maximum(h_last @ params["fc1_w"].T + params["fc1_b"], 0.0)
    return z @ params["fc2_w"].T + params["fc2_b"]


# -----------------------------------------------------------------------------
if __name__ == "__main__":
    input_size, hidden_size, num_layers, output_size = 4, 32, 2, 1
    batch, seq = 2, 8

    key = jax.random.PRNGKey(0)
    key, pkey, xkey = jax.random.split(key, 3)
    params = init_params(pkey, input_size, hidden_size, num_layers, output_size)
    x = jax.random.normal(xkey, (batch, seq, input_size), jnp.float32)

    fwd = jax.jit(sales_lstm_forward)
    out = jax.block_until_ready(fwd(x, params))
    ref = jax.block_until_ready(reference_forward(x, params))

    assert out.shape == (batch, output_size)
    # bf16 matmul operands (f32 accumulation) vs. the f32 reference -> loose tol.
    np.testing.assert_allclose(np.asarray(out), np.asarray(ref), rtol=2e-2, atol=3e-2)

    print("KERNEL_OK")
</pallas_src>

<mosaic_0001>
module attributes {stable_mosaic.version = 11 : i64} {
  func.func @kernel(%arg0: memref<64x16xbf16, #tpu.memory_space<vmem>>, %arg1: memref<8x128xf32, #tpu.memory_space<vmem>>, %arg2: memref<32x128xbf16, #tpu.memory_space<vmem>>, %arg3: memref<8x128xf32, #tpu.memory_space<vmem>>, %arg4: memref<48x128xbf16, #tpu.memory_space<vmem>>, %arg5: memref<64x128xbf16, #tpu.memory_space<vmem>>, %arg6: memref<8x1xf32, #tpu.memory_space<vmem>>, %arg7: memref<64x32xf32, #tpu.memory_space<vmem>>) attributes {dimension_semantics = [], scalar_prefetch = 0 : i64, scratch_operands = 1 : i64, tpu.core_type = #tpu.core_type<tc>} {
    %c0 = arith.constant 0 : index
    %c0_0 = arith.constant 0 : index
    %0 = vector.load %arg0[%c0, %c0_0] : memref<64x16xbf16, #tpu.memory_space<vmem>>, vector<64x16xbf16>
    %c0_1 = arith.constant 0 : index
    %c0_2 = arith.constant 0 : index
    %1 = vector.load %arg4[%c0_1, %c0_2] : memref<48x128xbf16, #tpu.memory_space<vmem>>, vector<16x128xbf16>
    %c16 = arith.constant 16 : index
    %c0_3 = arith.constant 0 : index
    %2 = vector.load %arg4[%c16, %c0_3] : memref<48x128xbf16, #tpu.memory_space<vmem>>, vector<32x128xbf16>
    %c0_4 = arith.constant 0 : index
    %c0_5 = arith.constant 0 : index
    %3 = vector.load %arg1[%c0_4, %c0_5] : memref<8x128xf32, #tpu.memory_space<vmem>>, vector<1x128xf32>
    %cst = arith.constant dense<0.000000e+00> : vector<64x128xf32>
    %4 = tpu.matmul %0, %1, %cst {dimension_numbers = #tpu.dot_dimension_numbers<[1], [0], [0], [1], [0, 0, 1, 1], [], []>} : vector<64x16xbf16>, vector<16x128xbf16>, vector<64x128xf32> -> vector<64x128xf32>
    %5 = vector.broadcast %3 : vector<1x128xf32> to vector<64x128xf32>
    %6 = arith.addf %4, %5 : vector<64x128xf32>
    %cst_6 = arith.constant 0.000000e+00 : f32
    %7 = vector.broadcast %cst_6 : f32 to vector<8x32xf32>
    %cst_7 = arith.constant 0.000000e+00 : f32
    %8 = vector.broadcast %cst_7 : f32 to vector<8x32xf32>
    %9 = vector.extract_strided_slice %6 {offsets = [0, 0], sizes = [8, 128], strides = [1, 1]} : vector<64x128xf32> to vector<8x128xf32>
    %10 = arith.truncf %7 : vector<8x32xf32> to vector<8x32xbf16>
    %cst_8 = arith.constant dense<0.000000e+00> : vector<8x128xf32>
    %11 = tpu.matmul %10, %2, %cst_8 {dimension_numbers = #tpu.dot_dimension_numbers<[1], [0], [0], [1], [0, 0, 1, 1], [], []>} : vector<8x32xbf16>, vector<32x128xbf16>, vector<8x128xf32> -> vector<8x128xf32>
    %12 = arith.addf %9, %11 : vector<8x128xf32>
    %13 = arith.negf %12 : vector<8x128xf32>
    %14 = math.exp %13 : vector<8x128xf32>
    %cst_9 = arith.constant 1.000000e+00 : f32
    %15 = vector.broadcast %cst_9 : f32 to vector<8x128xf32>
    %16 = arith.addf %15, %14 : vector<8x128xf32>
    %17 = arith.divf %15, %16 : vector<8x128xf32>
    %18 = math.tanh %12 : vector<8x128xf32>
    %19 = vector.extract_strided_slice %17 {offsets = [0, 0], sizes = [8, 32], strides = [1, 1]} : vector<8x128xf32> to vector<8x32xf32>
    %20 = vector.extract_strided_slice %17 {offsets = [0, 32], sizes = [8, 32], strides = [1, 1]} : vector<8x128xf32> to vector<8x32xf32>
    %21 = vector.extract_strided_slice %18 {offsets = [0, 64], sizes = [8, 32], strides = [1, 1]} : vector<8x128xf32> to vector<8x32xf32>
    %22 = vector.extract_strided_slice %17 {offsets = [0, 96], sizes = [8, 32], strides = [1, 1]} : vector<8x128xf32> to vector<8x32xf32>
    %23 = arith.mulf %20, %8 : vector<8x32xf32>
    %24 = arith.mulf %19, %21 : vector<8x32xf32>
    %25 = arith.addf %23, %24 : vector<8x32xf32>
    %26 = math.tanh %25 : vector<8x32xf32>
    %27 = arith.mulf %22, %26 : vector<8x32xf32>
    %c0_10 = arith.constant 0 : index
    %c0_11 = arith.constant 0 : index
    %28 = vector.load %arg7[%c0_10, %c0_11] : memref<64x32xf32, #tpu.memory_space<vmem>>, vector<8x32xf32>
    tpu.vector_store %arg7[%c0_10, %c0_11], %27 {strides = array<i32>} : memref<64x32xf32, #tpu.memory_space<vmem>>, vector<8x32xf32>,
    %29 = vector.extract_strided_slice %6 {offsets = [8, 0], sizes = [8, 128], strides = [1, 1]} : vector<64x128xf32> to vector<8x128xf32>
    %30 = arith.truncf %27 : vector<8x32xf32> to vector<8x32xbf16>
    %cst_12 = arith.constant dense<0.000000e+00> : vector<8x128xf32>
    %31 = tpu.matmul %30, %2, %cst_12 {dimension_numbers = #tpu.dot_dimension_numbers<[1], [0], [0], [1], [0, 0, 1, 1], [], []>} : vector<8x32xbf16>, vector<32x128xbf16>, vector<8x128xf32> -> vector<8x128xf32>
    %32 = arith.addf %29, %31 : vector<8x128xf32>
    %33 = arith.negf %32 : vector<8x128xf32>
    %34 = math.exp %33 : vector<8x128xf32>
    %cst_13 = arith.constant 1.000000e+00 : f32
    %35 = vector.broadcast %cst_13 : f32 to vector<8x128xf32>
    %36 = arith.addf %35, %34 : vector<8x128xf32>
    %37 = arith.divf %35, %36 : vector<8x128xf32>
    %38 = math.tanh %32 : vector<8x128xf32>
    %39 = vector.extract_strided_slice %37 {offsets = [0, 0], sizes = [8, 32], strides = [1, 1]} : vector<8x128xf32> to vector<8x32xf32>
    %40 = vector.extract_strided_slice %37 {offsets = [0, 32], sizes = [8, 32], strides = [1, 1]} : vector<8x128xf32> to vector<8x32xf32>
    %41 = vector.extract_strided_slice %38 {offsets = [0, 64], sizes = [8, 32], strides = [1, 1]} : vector<8x128xf32> to vector<8x32xf32>
    %42 = vector.extract_strided_slice %37 {offsets = [0, 96], sizes = [8, 32], strides = [1, 1]} : vector<8x128xf32> to vector<8x32xf32>
    %43 = arith.mulf %40, %25 : vector<8x32xf32>
    %44 = arith.mulf %39, %41 : vector<8x32xf32>
    %45 = arith.addf %43, %44 : vector<8x32xf32>
    %46 = math.tanh %45 : vector<8x32xf32>
    %47 = arith.mulf %42, %46 : vector<8x32xf32>
    %c8 = arith.constant 8 : index
    %c0_14 = arith.constant 0 : index
    %48 = vector.load %arg7[%c8, %c0_14] : memref<64x32xf32, #tpu.memory_space<vmem>>, vector<8x32xf32>
    tpu.vector_store %arg7[%c8, %c0_14], %47 {strides = array<i32>} : memref<64x32xf32, #tpu.memory_space<vmem>>, vector<8x32xf32>,
    %49 = vector.extract_strided_slice %6 {offsets = [16, 0], sizes = [8, 128], strides = [1, 1]} : vector<64x128xf32> to vector<8x128xf32>
    %50 = arith.truncf %47 : vector<8x32xf32> to vector<8x32xbf16>
    %cst_15 = arith.constant dense<0.000000e+00> : vector<8x128xf32>
    %51 = tpu.matmul %50, %2, %cst_15 {dimension_numbers = #tpu.dot_dimension_numbers<[1], [0], [0], [1], [0, 0, 1, 1], [], []>} : vector<8x32xbf16>, vector<32x128xbf16>, vector<8x128xf32> -> vector<8x128xf32>
    %52 = arith.addf %49, %51 : vector<8x128xf32>
    %53 = arith.negf %52 : vector<8x128xf32>
    %54 = math.exp %53 : vector<8x128xf32>
    %cst_16 = arith.constant 1.000000e+00 : f32
    %55 = vector.broadcast %cst_16 : f32 to vector<8x128xf32>
    %56 = arith.addf %55, %54 : vector<8x128xf32>
    %57 = arith.divf %55, %56 : vector<8x128xf32>
    %58 = math.tanh %52 : vector<8x128xf32>
    %59 = vector.extract_strided_slice %57 {offsets = [0, 0], sizes = [8, 32], strides = [1, 1]} : vector<8x128xf32> to vector<8x32xf32>
    %60 = vector.extract_strided_slice %57 {offsets = [0, 32], sizes = [8, 32], strides = [1, 1]} : vector<8x128xf32> to vector<8x32xf32>
    %61 = vector.extract_strided_slice %58 {offsets = [0, 64], sizes = [8, 32], strides = [1, 1]} : vector<8x128xf32> to vector<8x32xf32>
    %62 = vector.extract_strided_slice %57 {offsets = [0, 96], sizes = [8, 32], strides = [1, 1]} : vector<8x128xf32> to vector<8x32xf32>
    %63 = arith.mulf %60, %45 : vector<8x32xf32>
    %64 = arith.mulf %59, %61 : vector<8x32xf32>
    %65 = arith.addf %63, %64 : vector<8x32xf32>
    %66 = math.tanh %65 : vector<8x32xf32>
    %67 = arith.mulf %62, %66 : vector<8x32xf32>
    %c16_17 = arith.constant 16 : index
    %c0_18 = arith.constant 0 : index
    %68 = vector.load %arg7[%c16_17, %c0_18] : memref<64x32xf32, #tpu.memory_space<vmem>>, vector<8x32xf32>
    tpu.vector_store %arg7[%c16_17, %c0_18], %67 {strides = array<i32>} : memref<64x32xf32, #tpu.memory_space<vmem>>, vector<8x32xf32>,
    %69 = vector.extract_strided_slice %6 {offsets = [24, 0], sizes = [8, 128], strides = [1, 1]} : vector<64x128xf32> to vector<8x128xf32>
    %70 = arith.truncf %67 : vector<8x32xf32> to vector<8x32xbf16>
    %cst_19 = arith.constant dense<0.000000e+00> : vector<8x128xf32>
    %71 = tpu.matmul %70, %2, %cst_19 {dimension_numbers = #tpu.dot_dimension_numbers<[1], [0], [0], [1], [0, 0, 1, 1], [], []>} : vector<8x32xbf16>, vector<32x128xbf16>, vector<8x128xf32> -> vector<8x128xf32>
    %72 = arith.addf %69, %71 : vector<8x128xf32>
    %73 = arith.negf %72 : vector<8x128xf32>
    %74 = math.exp %73 : vector<8x128xf32>
    %cst_20 = arith.constant 1.000000e+00 : f32
    %75 = vector.broadcast %cst_20 : f32 to vector<8x128xf32>
    %76 = arith.addf %75, %74 : vector<8x128xf32>
    %77 = arith.divf %75, %76 : vector<8x128xf32>
    %78 = math.tanh %72 : vector<8x128xf32>
    %79 = vector.extract_strided_slice %77 {offsets = [0, 0], sizes = [8, 32], strides = [1, 1]} : vector<8x128xf32> to vector<8x32xf32>
    %80 = vector.extract_strided_slice %77 {offsets = [0, 32], sizes = [8, 32], strides = [1, 1]} : vector<8x128xf32> to vector<8x32xf32>
    %81 = vector.extract_strided_slice %78 {offsets = [0, 64], sizes = [8, 32], strides = [1, 1]} : vector<8x128xf32> to vector<8x32xf32>
    %82 = vector.extract_strided_slice %77 {offsets = [0, 96], sizes = [8, 32], strides = [1, 1]} : vector<8x128xf32> to vector<8x32xf32>
    %83 = arith.mulf %80, %65 : vector<8x32xf32>
    %84 = arith.mulf %79, %81 : vector<8x32xf32>
    %85 = arith.addf %83, %84 : vector<8x32xf32>
    %86 = math.tanh %85 : vector<8x32xf32>
    %87 = arith.mulf %82, %86 : vector<8x32xf32>
    %c24 = arith.constant 24 : index
    %c0_21 = arith.constant 0 : index
    %88 = vector.load %arg7[%c24, %c0_21] : memref<64x32xf32, #tpu.memory_space<vmem>>, vector<8x32xf32>
    tpu.vector_store %arg7[%c24, %c0_21], %87 {strides = array<i32>} : memref<64x32xf32, #tpu.memory_space<vmem>>, vector<8x32xf32>,
    %89 = vector.extract_strided_slice %6 {offsets = [32, 0], sizes = [8, 128], strides = [1, 1]} : vector<64x128xf32> to vector<8x128xf32>
    %90 = arith.truncf %87 : vector<8x32xf32> to vector<8x32xbf16>
    %cst_22 = arith.constant dense<0.000000e+00> : vector<8x128xf32>
    %91 = tpu.matmul %90, %2, %cst_22 {dimension_numbers = #tpu.dot_dimension_numbers<[1], [0], [0], [1], [0, 0, 1, 1], [], []>} : vector<8x32xbf16>, vector<32x128xbf16>, vector<8x128xf32> -> vector<8x128xf32>
    %92 = arith.addf %89, %91 : vector<8x128xf32>
    %93 = arith.negf %92 : vector<8x128xf32>
    %94 = math.exp %93 : vector<8x128xf32>
    %cst_23 = arith.constant 1.000000e+00 : f32
    %95 = vector.broadcast %cst_23 : f32 to vector<8x128xf32>
    %96 = arith.addf %95, %94 : vector<8x128xf32>
    %97 = arith.divf %95, %96 : vector<8x128xf32>
    %98 = math.tanh %92 : vector<8x128xf32>
    %99 = vector.extract_strided_slice %97 {offsets = [0, 0], sizes = [8, 32], strides = [1, 1]} : vector<8x128xf32> to vector<8x32xf32>
    %100 = vector.extract_strided_slice %97 {offsets = [0, 32], sizes = [8, 32], strides = [1, 1]} : vector<8x128xf32> to vector<8x32xf32>
    %101 = vector.extract_strided_slice %98 {offsets = [0, 64], sizes = [8, 32], strides = [1, 1]} : vector<8x128xf32> to vector<8x32xf32>
    %102 = vector.extract_strided_slice %97 {offsets = [0, 96], sizes = [8, 32], strides = [1, 1]} : vector<8x128xf32> to vector<8x32xf32>
    %103 = arith.mulf %100, %85 : vector<8x32xf32>
    %104 = arith.mulf %99, %101 : vector<8x32xf32>
    %105 = arith.addf %103, %104 : vector<8x32xf32>
    %106 = math.tanh %105 : vector<8x32xf32>
    %107 = arith.mulf %102, %106 : vector<8x32xf32>
    %c32 = arith.constant 32 : index
    %c0_24 = arith.constant 0 : index
    %108 = vector.load %arg7[%c32, %c0_24] : memref<64x32xf32, #tpu.memory_space<vmem>>, vector<8x32xf32>
    tpu.vector_store %arg7[%c32, %c0_24], %107 {strides = array<i32>} : memref<64x32xf32, #tpu.memory_space<vmem>>, vector<8x32xf32>,
    %109 = vector.extract_strided_slice %6 {offsets = [40, 0], sizes = [8, 128], strides = [1, 1]} : vector<64x128xf32> to vector<8x128xf32>
    %110 = arith.truncf %107 : vector<8x32xf32> to vector<8x32xbf16>
    %cst_25 = arith.constant dense<0.000000e+00> : vector<8x128xf32>
    %111 = tpu.matmul %110, %2, %cst_25 {dimension_numbers = #tpu.dot_dimension_numbers<[1], [0], [0], [1], [0, 0, 1, 1], [], []>} : vector<8x32xbf16>, vector<32x128xbf16>, vector<8x128xf32> -> vector<8x128xf32>
    %112 = arith.addf %109, %111 : vector<8x128xf32>
    %113 = arith.negf %112 : vector<8x128xf32>
    %114 = math.exp %113 : vector<8x128xf32>
    %cst_26 = arith.constant 1.000000e+00 : f32
    %115 = vector.broadcast %cst_26 : f32 to vector<8x128xf32>
    %116 = arith.addf %115, %114 : vector<8x128xf32>
    %117 = arith.divf %115, %116 : vector<8x128xf32>
    %118 = math.tanh %112 : vector<8x128xf32>
    %119 = vector.extract_strided_slice %117 {offsets = [0, 0], sizes = [8, 32], strides = [1, 1]} : vector<8x128xf32> to vector<8x32xf32>
    %120 = vector.extract_strided_slice %117 {offsets = [0, 32], sizes = [8, 32], strides = [1, 1]} : vector<8x128xf32> to vector<8x32xf32>
    %121 = vector.extract_strided_slice %118 {offsets = [0, 64], sizes = [8, 32], strides = [1, 1]} : vector<8x128xf32> to vector<8x32xf32>
    %122 = vector.extract_strided_slice %117 {offsets = [0, 96], sizes = [8, 32], strides = [1, 1]} : vector<8x128xf32> to vector<8x32xf32>
    %123 = arith.mulf %120, %105 : vector<8x32xf32>
    %124 = arith.mulf %119, %121 : vector<8x32xf32>
    %125 = arith.addf %123, %124 : vector<8x32xf32>
    %126 = math.tanh %125 : vector<8x32xf32>
    %127 = arith.mulf %122, %126 : vector<8x32xf32>
    %c40 = arith.constant 40 : index
    %c0_27 = arith.constant 0 : index
    %128 = vector.load %arg7[%c40, %c0_27] : memref<64x32xf32, #tpu.memory_space<vmem>>, vector<8x32xf32>
    tpu.vector_store %arg7[%c40, %c0_27], %127 {strides = array<i32>} : memref<64x32xf32, #tpu.memory_space<vmem>>, vector<8x32xf32>,
    %129 = vector.extract_strided_slice %6 {offsets = [48, 0], sizes = [8, 128], strides = [1, 1]} : vector<64x128xf32> to vector<8x128xf32>
    %130 = arith.truncf %127 : vector<8x32xf32> to vector<8x32xbf16>
    %cst_28 = arith.constant dense<0.000000e+00> : vector<8x128xf32>
    %131 = tpu.matmul %130, %2, %cst_28 {dimension_numbers = #tpu.dot_dimension_numbers<[1], [0], [0], [1], [0, 0, 1, 1], [], []>} : vector<8x32xbf16>, vector<32x128xbf16>, vector<8x128xf32> -> vector<8x128xf32>
    %132 = arith.addf %129, %131 : vector<8x128xf32>
    %133 = arith.negf %132 : vector<8x128xf32>
    %134 = math.exp %133 : vector<8x128xf32>
    %cst_29 = arith.constant 1.000000e+00 : f32
    %135 = vector.broadcast %cst_29 : f32 to vector<8x128xf32>
    %136 = arith.addf %135, %134 : vector<8x128xf32>
    %137 = arith.divf %135, %136 : vector<8x128xf32>
    %138 = math.tanh %132 : vector<8x128xf32>
    %139 = vector.extract_strided_slice %137 {offsets = [0, 0], sizes = [8, 32], strides = [1, 1]} : vector<8x128xf32> to vector<8x32xf32>
    %140 = vector.extract_strided_slice %137 {offsets = [0, 32], sizes = [8, 32], strides = [1, 1]} : vector<8x128xf32> to vector<8x32xf32>
    %141 = vector.extract_strided_slice %138 {offsets = [0, 64], sizes = [8, 32], strides = [1, 1]} : vector<8x128xf32> to vector<8x32xf32>
    %142 = vector.extract_strided_slice %137 {offsets = [0, 96], sizes = [8, 32], strides = [1, 1]} : vector<8x128xf32> to vector<8x32xf32>
    %143 = arith.mulf %140, %125 : vector<8x32xf32>
    %144 = arith.mulf %139, %141 : vector<8x32xf32>
    %145 = arith.addf %143, %144 : vector<8x32xf32>
    %146 = math.tanh %145 : vector<8x32xf32>
    %147 = arith.mulf %142, %146 : vector<8x32xf32>
    %c48 = arith.constant 48 : index
    %c0_30 = arith.constant 0 : index
    %148 = vector.load %arg7[%c48, %c0_30] : memref<64x32xf32, #tpu.memory_space<vmem>>, vector<8x32xf32>
    tpu.vector_store %arg7[%c48, %c0_30], %147 {strides = array<i32>} : memref<64x32xf32, #tpu.memory_space<vmem>>, vector<8x32xf32>,
    %149 = vector.extract_strided_slice %6 {offsets = [56, 0], sizes = [8, 128], strides = [1, 1]} : vector<64x128xf32> to vector<8x128xf32>
    %150 = arith.truncf %147 : vector<8x32xf32> to vector<8x32xbf16>
    %cst_31 = arith.constant dense<0.000000e+00> : vector<8x128xf32>
    %151 = tpu.matmul %150, %2, %cst_31 {dimension_numbers = #tpu.dot_dimension_numbers<[1], [0], [0], [1], [0, 0, 1, 1], [], []>} : vector<8x32xbf16>, vector<32x128xbf16>, vector<8x128xf32> -> vector<8x128xf32>
    %152 = arith.addf %149, %151 : vector<8x128xf32>
    %153 = arith.negf %152 : vector<8x128xf32>
    %154 = math.exp %153 : vector<8x128xf32>
    %cst_32 = arith.constant 1.000000e+00 : f32
    %155 = vector.broadcast %cst_32 : f32 to vector<8x128xf32>
    %156 = arith.addf %155, %154 : vector<8x128xf32>
    %157 = arith.divf %155, %156 : vector<8x128xf32>
    %158 = math.tanh %152 : vector<8x128xf32>
    %159 = vector.extract_strided_slice %157 {offsets = [0, 0], sizes = [8, 32], strides = [1, 1]} : vector<8x128xf32> to vector<8x32xf32>
    %160 = vector.extract_strided_slice %157 {offsets = [0, 32], sizes = [8, 32], strides = [1, 1]} : vector<8x128xf32> to vector<8x32xf32>
    %161 = vector.extract_strided_slice %158 {offsets = [0, 64], sizes = [8, 32], strides = [1, 1]} : vector<8x128xf32> to vector<8x32xf32>
    %162 = vector.extract_strided_slice %157 {offsets = [0, 96], sizes = [8, 32], strides = [1, 1]} : vector<8x128xf32> to vector<8x32xf32>
    %163 = arith.mulf %160, %145 : vector<8x32xf32>
    %164 = arith.mulf %159, %161 : vector<8x32xf32>
    %165 = arith.addf %163, %164 : vector<8x32xf32>
    %166 = math.tanh %165 : vector<8x32xf32>
    %167 = arith.mulf %162, %166 : vector<8x32xf32>
    %c56 = arith.constant 56 : index
    %c0_33 = arith.constant 0 : index
    %168 = vector.load %arg7[%c56, %c0_33] : memref<64x32xf32, #tpu.memory_space<vmem>>, vector<8x32xf32>
    tpu.vector_store %arg7[%c56, %c0_33], %167 {strides = array<i32>} : memref<64x32xf32, #tpu.memory_space<vmem>>, vector<8x32xf32>,
    %c0_34 = arith.constant 0 : index
    %c0_35 = arith.constant 0 : index
    %169 = vector.load %arg7[%c0_34, %c0_35] : memref<64x32xf32, #tpu.memory_space<vmem>>, vector<64x32xf32>
    %170 = arith.truncf %169 : vector<64x32xf32> to vector<64x32xbf16>
    %c0_36 = arith.constant 0 : index
    %c0_37 = arith.constant 0 : index
    %171 = vector.load %arg5[%c0_36, %c0_37] : memref<64x128xbf16, #tpu.memory_space<vmem>>, vector<32x128xbf16>
    %c32_38 = arith.constant 32 : index
    %c0_39 = arith.constant 0 : index
    %172 = vector.load %arg5[%c32_38, %c0_39] : memref<64x128xbf16, #tpu.memory_space<vmem>>, vector<32x128xbf16>
    %c1 = arith.constant 1 : index
    %c0_40 = arith.constant 0 : index
    %173 = vector.load %arg1[%c1, %c0_40] : memref<8x128xf32, #tpu.memory_space<vmem>>, vector<1x128xf32>
    %cst_41 = arith.constant dense<0.000000e+00> : vector<64x128xf32>
    %174 = tpu.matmul %170, %171, %cst_41 {dimension_numbers = #tpu.dot_dimension_numbers<[1], [0], [0], [1], [0, 0, 1, 1], [], []>} : vector<64x32xbf16>, vector<32x128xbf16>, vector<64x128xf32> -> vector<64x128xf32>
    %175 = vector.broadcast %173 : vector<1x128xf32> to vector<64x128xf32>
    %176 = arith.addf %174, %175 : vector<64x128xf32>
    %cst_42 = arith.constant 0.000000e+00 : f32
    %177 = vector.broadcast %cst_42 : f32 to vector<8x32xf32>
    %cst_43 = arith.constant 0.000000e+00 : f32
    %178 = vector.broadcast %cst_43 : f32 to vector<8x32xf32>
    %179 = vector.extract_strided_slice %176 {offsets = [0, 0], sizes = [8, 128], strides = [1, 1]} : vector<64x128xf32> to vector<8x128xf32>
    %180 = arith.truncf %177 : vector<8x32xf32> to vector<8x32xbf16>
    %cst_44 = arith.constant dense<0.000000e+00> : vector<8x128xf32>
    %181 = tpu.matmul %180, %172, %cst_44 {dimension_numbers = #tpu.dot_dimension_numbers<[1], [0], [0], [1], [0, 0, 1, 1], [], []>} : vector<8x32xbf16>, vector<32x128xbf16>, vector<8x128xf32> -> vector<8x128xf32>
    %182 = arith.addf %179, %181 : vector<8x128xf32>
    %183 = arith.negf %182 : vector<8x128xf32>
    %184 = math.exp %183 : vector<8x128xf32>
    %cst_45 = arith.constant 1.000000e+00 : f32
    %185 = vector.broadcast %cst_45 : f32 to vector<8x128xf32>
    %186 = arith.addf %185, %184 : vector<8x128xf32>
    %187 = arith.divf %185, %186 : vector<8x128xf32>
    %188 = math.tanh %182 : vector<8x128xf32>
    %189 = vector.extract_strided_slice %187 {offsets = [0, 0], sizes = [8, 32], strides = [1, 1]} : vector<8x128xf32> to vector<8x32xf32>
    %190 = vector.extract_strided_slice %187 {offsets = [0, 32], sizes = [8, 32], strides = [1, 1]} : vector<8x128xf32> to vector<8x32xf32>
    %191 = vector.extract_strided_slice %188 {offsets = [0, 64], sizes = [8, 32], strides = [1, 1]} : vector<8x128xf32> to vector<8x32xf32>
    %192 = vector.extract_strided_slice %187 {offsets = [0, 96], sizes = [8, 32], strides = [1, 1]} : vector<8x128xf32> to vector<8x32xf32>
    %193 = arith.mulf %190, %178 : vector<8x32xf32>
    %194 = arith.mulf %189, %191 : vector<8x32xf32>
    %195 = arith.addf %193, %194 : vector<8x32xf32>
    %196 = math.tanh %195 : vector<8x32xf32>
    %197 = arith.mulf %192, %196 : vector<8x32xf32>
    %198 = vector.extract_strided_slice %176 {offsets = [8, 0], sizes = [8, 128], strides = [1, 1]} : vector<64x128xf32> to vector<8x128xf32>
    %199 = arith.truncf %197 : vector<8x32xf32> to vector<8x32xbf16>
    %cst_46 = arith.constant dense<0.000000e+00> : vector<8x128xf32>
    %200 = tpu.matmul %199, %172, %cst_46 {dimension_numbers = #tpu.dot_dimension_numbers<[1], [0], [0], [1], [0, 0, 1, 1], [], []>} : vector<8x32xbf16>, vector<32x128xbf16>, vector<8x128xf32> -> vector<8x128xf32>
    %201 = arith.addf %198, %200 : vector<8x128xf32>
    %202 = arith.negf %201 : vector<8x128xf32>
    %203 = math.exp %202 : vector<8x128xf32>
    %cst_47 = arith.constant 1.000000e+00 : f32
    %204 = vector.broadcast %cst_47 : f32 to vector<8x128xf32>
    %205 = arith.addf %204, %203 : vector<8x128xf32>
    %206 = arith.divf %204, %205 : vector<8x128xf32>
    %207 = math.tanh %201 : vector<8x128xf32>
    %208 = vector.extract_strided_slice %206 {offsets = [0, 0], sizes = [8, 32], strides = [1, 1]} : vector<8x128xf32> to vector<8x32xf32>
    %209 = vector.extract_strided_slice %206 {offsets = [0, 32], sizes = [8, 32], strides = [1, 1]} : vector<8x128xf32> to vector<8x32xf32>
    %210 = vector.extract_strided_slice %207 {offsets = [0, 64], sizes = [8, 32], strides = [1, 1]} : vector<8x128xf32> to vector<8x32xf32>
    %211 = vector.extract_strided_slice %206 {offsets = [0, 96], sizes = [8, 32], strides = [1, 1]} : vector<8x128xf32> to vector<8x32xf32>
    %212 = arith.mulf %209, %195 : vector<8x32xf32>
    %213 = arith.mulf %208, %210 : vector<8x32xf32>
    %214 = arith.addf %212, %213 : vector<8x32xf32>
    %215 = math.tanh %214 : vector<8x32xf32>
    %216 = arith.mulf %211, %215 : vector<8x32xf32>
    %217 = vector.extract_strided_slice %176 {offsets = [16, 0], sizes = [8, 128], strides = [1, 1]} : vector<64x128xf32> to vector<8x128xf32>
    %218 = arith.truncf %216 : vector<8x32xf32> to vector<8x32xbf16>
    %cst_48 = arith.constant dense<0.000000e+00> : vector<8x128xf32>
    %219 = tpu.matmul %218, %172, %cst_48 {dimension_numbers = #tpu.dot_dimension_numbers<[1], [0], [0], [1], [0, 0, 1, 1], [], []>} : vector<8x32xbf16>, vector<32x128xbf16>, vector<8x128xf32> -> vector<8x128xf32>
    %220 = arith.addf %217, %219 : vector<8x128xf32>
    %221 = arith.negf %220 : vector<8x128xf32>
    %222 = math.exp %221 : vector<8x128xf32>
    %cst_49 = arith.constant 1.000000e+00 : f32
    %223 = vector.broadcast %cst_49 : f32 to vector<8x128xf32>
    %224 = arith.addf %223, %222 : vector<8x128xf32>
    %225 = arith.divf %223, %224 : vector<8x128xf32>
    %226 = math.tanh %220 : vector<8x128xf32>
    %227 = vector.extract_strided_slice %225 {offsets = [0, 0], sizes = [8, 32], strides = [1, 1]} : vector<8x128xf32> to vector<8x32xf32>
    %228 = vector.extract_strided_slice %225 {offsets = [0, 32], sizes = [8, 32], strides = [1, 1]} : vector<8x128xf32> to vector<8x32xf32>
    %229 = vector.extract_strided_slice %226 {offsets = [0, 64], sizes = [8, 32], strides = [1, 1]} : vector<8x128xf32> to vector<8x32xf32>
    %230 = vector.extract_strided_slice %225 {offsets = [0, 96], sizes = [8, 32], strides = [1, 1]} : vector<8x128xf32> to vector<8x32xf32>
    %231 = arith.mulf %228, %214 : vector<8x32xf32>
    %232 = arith.mulf %227, %229 : vector<8x32xf32>
    %233 = arith.addf %231, %232 : vector<8x32xf32>
    %234 = math.tanh %233 : vector<8x32xf32>
    %235 = arith.mulf %230, %234 : vector<8x32xf32>
    %236 = vector.extract_strided_slice %176 {offsets = [24, 0], sizes = [8, 128], strides = [1, 1]} : vector<64x128xf32> to vector<8x128xf32>
    %237 = arith.truncf %235 : vector<8x32xf32> to vector<8x32xbf16>
    %cst_50 = arith.constant dense<0.000000e+00> : vector<8x128xf32>
    %238 = tpu.matmul %237, %172, %cst_50 {dimension_numbers = #tpu.dot_dimension_numbers<[1], [0], [0], [1], [0, 0, 1, 1], [], []>} : vector<8x32xbf16>, vector<32x128xbf16>, vector<8x128xf32> -> vector<8x128xf32>
    %239 = arith.addf %236, %238 : vector<8x128xf32>
    %240 = arith.negf %239 : vector<8x128xf32>
    %241 = math.exp %240 : vector<8x128xf32>
    %cst_51 = arith.constant 1.000000e+00 : f32
    %242 = vector.broadcast %cst_51 : f32 to vector<8x128xf32>
    %243 = arith.addf %242, %241 : vector<8x128xf32>
    %244 = arith.divf %242, %243 : vector<8x128xf32>
    %245 = math.tanh %239 : vector<8x128xf32>
    %246 = vector.extract_strided_slice %244 {offsets = [0, 0], sizes = [8, 32], strides = [1, 1]} : vector<8x128xf32> to vector<8x32xf32>
    %247 = vector.extract_strided_slice %244 {offsets = [0, 32], sizes = [8, 32], strides = [1, 1]} : vector<8x128xf32> to vector<8x32xf32>
    %248 = vector.extract_strided_slice %245 {offsets = [0, 64], sizes = [8, 32], strides = [1, 1]} : vector<8x128xf32> to vector<8x32xf32>
    %249 = vector.extract_strided_slice %244 {offsets = [0, 96], sizes = [8, 32], strides = [1, 1]} : vector<8x128xf32> to vector<8x32xf32>
    %250 = arith.mulf %247, %233 : vector<8x32xf32>
    %251 = arith.mulf %246, %248 : vector<8x32xf32>
    %252 = arith.addf %250, %251 : vector<8x32xf32>
    %253 = math.tanh %252 : vector<8x32xf32>
    %254 = arith.mulf %249, %253 : vector<8x32xf32>
    %255 = vector.extract_strided_slice %176 {offsets = [32, 0], sizes = [8, 128], strides = [1, 1]} : vector<64x128xf32> to vector<8x128xf32>
    %256 = arith.truncf %254 : vector<8x32xf32> to vector<8x32xbf16>
    %cst_52 = arith.constant dense<0.000000e+00> : vector<8x128xf32>
    %257 = tpu.matmul %256, %172, %cst_52 {dimension_numbers = #tpu.dot_dimension_numbers<[1], [0], [0], [1], [0, 0, 1, 1], [], []>} : vector<8x32xbf16>, vector<32x128xbf16>, vector<8x128xf32> -> vector<8x128xf32>
    %258 = arith.addf %255, %257 : vector<8x128xf32>
    %259 = arith.negf %258 : vector<8x128xf32>
    %260 = math.exp %259 : vector<8x128xf32>
    %cst_53 = arith.constant 1.000000e+00 : f32
    %261 = vector.broadcast %cst_53 : f32 to vector<8x128xf32>
    %262 = arith.addf %261, %260 : vector<8x128xf32>
    %263 = arith.divf %261, %262 : vector<8x128xf32>
    %264 = math.tanh %258 : vector<8x128xf32>
    %265 = vector.extract_strided_slice %263 {offsets = [0, 0], sizes = [8, 32], strides = [1, 1]} : vector<8x128xf32> to vector<8x32xf32>
    %266 = vector.extract_strided_slice %263 {offsets = [0, 32], sizes = [8, 32], strides = [1, 1]} : vector<8x128xf32> to vector<8x32xf32>
    %267 = vector.extract_strided_slice %264 {offsets = [0, 64], sizes = [8, 32], strides = [1, 1]} : vector<8x128xf32> to vector<8x32xf32>
    %268 = vector.extract_strided_slice %263 {offsets = [0, 96], sizes = [8, 32], strides = [1, 1]} : vector<8x128xf32> to vector<8x32xf32>
    %269 = arith.mulf %266, %252 : vector<8x32xf32>
    %270 = arith.mulf %265, %267 : vector<8x32xf32>
    %271 = arith.addf %269, %270 : vector<8x32xf32>
    %272 = math.tanh %271 : vector<8x32xf32>
    %273 = arith.mulf %268, %272 : vector<8x32xf32>
    %274 = vector.extract_strided_slice %176 {offsets = [40, 0], sizes = [8, 128], strides = [1, 1]} : vector<64x128xf32> to vector<8x128xf32>
    %275 = arith.truncf %273 : vector<8x32xf32> to vector<8x32xbf16>
    %cst_54 = arith.constant dense<0.000000e+00> : vector<8x128xf32>
    %276 = tpu.matmul %275, %172, %cst_54 {dimension_numbers = #tpu.dot_dimension_numbers<[1], [0], [0], [1], [0, 0, 1, 1], [], []>} : vector<8x32xbf16>, vector<32x128xbf16>, vector<8x128xf32> -> vector<8x128xf32>
    %277 = arith.addf %274, %276 : vector<8x128xf32>
    %278 = arith.negf %277 : vector<8x128xf32>
    %279 = math.exp %278 : vector<8x128xf32>
    %cst_55 = arith.constant 1.000000e+00 : f32
    %280 = vector.broadcast %cst_55 : f32 to vector<8x128xf32>
    %281 = arith.addf %280, %279 : vector<8x128xf32>
    %282 = arith.divf %280, %281 : vector<8x128xf32>
    %283 = math.tanh %277 : vector<8x128xf32>
    %284 = vector.extract_strided_slice %282 {offsets = [0, 0], sizes = [8, 32], strides = [1, 1]} : vector<8x128xf32> to vector<8x32xf32>
    %285 = vector.extract_strided_slice %282 {offsets = [0, 32], sizes = [8, 32], strides = [1, 1]} : vector<8x128xf32> to vector<8x32xf32>
    %286 = vector.extract_strided_slice %283 {offsets = [0, 64], sizes = [8, 32], strides = [1, 1]} : vector<8x128xf32> to vector<8x32xf32>
    %287 = vector.extract_strided_slice %282 {offsets = [0, 96], sizes = [8, 32], strides = [1, 1]} : vector<8x128xf32> to vector<8x32xf32>
    %288 = arith.mulf %285, %271 : vector<8x32xf32>
    %289 = arith.mulf %284, %286 : vector<8x32xf32>
    %290 = arith.addf %288, %289 : vector<8x32xf32>
    %291 = math.tanh %290 : vector<8x32xf32>
    %292 = arith.mulf %287, %291 : vector<8x32xf32>
    %293 = vector.extract_strided_slice %176 {offsets = [48, 0], sizes = [8, 128], strides = [1, 1]} : vector<64x128xf32> to vector<8x128xf32>
    %294 = arith.truncf %292 : vector<8x32xf32> to vector<8x32xbf16>
    %cst_56 = arith.constant dense<0.000000e+00> : vector<8x128xf32>
    %295 = tpu.matmul %294, %172, %cst_56 {dimension_numbers = #tpu.dot_dimension_numbers<[1], [0], [0], [1], [0, 0, 1, 1], [], []>} : vector<8x32xbf16>, vector<32x128xbf16>, vector<8x128xf32> -> vector<8x128xf32>
    %296 = arith.addf %293, %295 : vector<8x128xf32>
    %297 = arith.negf %296 : vector<8x128xf32>
    %298 = math.exp %297 : vector<8x128xf32>
    %cst_57 = arith.constant 1.000000e+00 : f32
    %299 = vector.broadcast %cst_57 : f32 to vector<8x128xf32>
    %300 = arith.addf %299, %298 : vector<8x128xf32>
    %301 = arith.divf %299, %300 : vector<8x128xf32>
    %302 = math.tanh %296 : vector<8x128xf32>
    %303 = vector.extract_strided_slice %301 {offsets = [0, 0], sizes = [8, 32], strides = [1, 1]} : vector<8x128xf32> to vector<8x32xf32>
    %304 = vector.extract_strided_slice %301 {offsets = [0, 32], sizes = [8, 32], strides = [1, 1]} : vector<8x128xf32> to vector<8x32xf32>
    %305 = vector.extract_strided_slice %302 {offsets = [0, 64], sizes = [8, 32], strides = [1, 1]} : vector<8x128xf32> to vector<8x32xf32>
    %306 = vector.extract_strided_slice %301 {offsets = [0, 96], sizes = [8, 32], strides = [1, 1]} : vector<8x128xf32> to vector<8x32xf32>
    %307 = arith.mulf %304, %290 : vector<8x32xf32>
    %308 = arith.mulf %303, %305 : vector<8x32xf32>
    %309 = arith.addf %307, %308 : vector<8x32xf32>
    %310 = math.tanh %309 : vector<8x32xf32>
    %311 = arith.mulf %306, %310 : vector<8x32xf32>
    %312 = vector.extract_strided_slice %176 {offsets = [56, 0], sizes = [8, 128], strides = [1, 1]} : vector<64x128xf32> to vector<8x128xf32>
    %313 = arith.truncf %311 : vector<8x32xf32> to vector<8x32xbf16>
    %cst_58 = arith.constant dense<0.000000e+00> : vector<8x128xf32>
    %314 = tpu.matmul %313, %172, %cst_58 {dimension_numbers = #tpu.dot_dimension_numbers<[1], [0], [0], [1], [0, 0, 1, 1], [], []>} : vector<8x32xbf16>, vector<32x128xbf16>, vector<8x128xf32> -> vector<8x128xf32>
    %315 = arith.addf %312, %314 : vector<8x128xf32>
    %316 = arith.negf %315 : vector<8x128xf32>
    %317 = math.exp %316 : vector<8x128xf32>
    %cst_59 = arith.constant 1.000000e+00 : f32
    %318 = vector.broadcast %cst_59 : f32 to vector<8x128xf32>
    %319 = arith.addf %318, %317 : vector<8x128xf32>
    %320 = arith.divf %318, %319 : vector<8x128xf32>
    %321 = math.tanh %315 : vector<8x128xf32>
    %322 = vector.extract_strided_slice %320 {offsets = [0, 0], sizes = [8, 32], strides = [1, 1]} : vector<8x128xf32> to vector<8x32xf32>
    %323 = vector.extract_strided_slice %320 {offsets = [0, 32], sizes = [8, 32], strides = [1, 1]} : vector<8x128xf32> to vector<8x32xf32>
    %324 = vector.extract_strided_slice %321 {offsets = [0, 64], sizes = [8, 32], strides = [1, 1]} : vector<8x128xf32> to vector<8x32xf32>
    %325 = vector.extract_strided_slice %320 {offsets = [0, 96], sizes = [8, 32], strides = [1, 1]} : vector<8x128xf32> to vector<8x32xf32>
    %326 = arith.mulf %323, %309 : vector<8x32xf32>
    %327 = arith.mulf %322, %324 : vector<8x32xf32>
    %328 = arith.addf %326, %327 : vector<8x32xf32>
    %329 = math.tanh %328 : vector<8x32xf32>
    %330 = arith.mulf %325, %329 : vector<8x32xf32>
    %331 = arith.truncf %330 : vector<8x32xf32> to vector<8x32xbf16>
    %c0_60 = arith.constant 0 : index
    %c0_61 = arith.constant 0 : index
    %332 = vector.load %arg2[%c0_60, %c0_61] : memref<32x128xbf16, #tpu.memory_space<vmem>>, vector<32x128xbf16>
    %cst_62 = arith.constant dense<0.000000e+00> : vector<8x128xf32>
    %333 = tpu.matmul %331, %332, %cst_62 {dimension_numbers = #tpu.dot_dimension_numbers<[1], [0], [0], [1], [0, 0, 1, 1], [], []>} : vector<8x32xbf16>, vector<32x128xbf16>, vector<8x128xf32> -> vector<8x128xf32>
    %c0_63 = arith.constant 0 : index
    %c0_64 = arith.constant 0 : index
    %334 = vector.load %arg3[%c0_63, %c0_64] : memref<8x128xf32, #tpu.memory_space<vmem>>, vector<1x128xf32>
    %335 = vector.broadcast %334 : vector<1x128xf32> to vector<8x128xf32>
    %336 = arith.addf %333, %335 : vector<8x128xf32>
    %cst_65 = arith.constant 0.000000e+00 : f32
    %337 = vector.broadcast %cst_65 : f32 to vector<8x128xf32>
    %338 = arith.maximumf %336, %337 : vector<8x128xf32>
    %c2 = arith.constant 2 : index
    %c0_66 = arith.constant 0 : index
    %339 = vector.load %arg3[%c2, %c0_66] : memref<8x128xf32, #tpu.memory_space<vmem>>, vector<1x128xf32>
    %340 = vector.broadcast %339 : vector<1x128xf32> to vector<8x128xf32>
    %341 = arith.mulf %338, %340 : vector<8x128xf32>
    %cst_67 = arith.constant dense<0.000000e+00> : vector<8xf32>
    %342 = vector.multi_reduction <add>, %341, %cst_67 [1] : vector<8x128xf32> to vector<8xf32>
    %343 = vector.shape_cast %342 : vector<8xf32> to vector<8x1xf32>
    %c1_68 = arith.constant 1 : index
    %c0_69 = arith.constant 0 : index
    %344 = vector.load %arg3[%c1_68, %c0_69] : memref<8x128xf32, #tpu.memory_space<vmem>>, vector<1x1xf32>
    %345 = vector.broadcast %344 : vector<1x1xf32> to vector<8x1xf32>
    %346 = arith.addf %343, %345 : vector<8x1xf32>
    %c0_70 = arith.constant 0 : index
    %c0_71 = arith.constant 0 : index
    %347 = vector.load %arg6[%c0_70, %c0_71] : memref<8x1xf32, #tpu.memory_space<vmem>>, vector<8x1xf32>
    tpu.vector_store %arg6[%c0_70, %c0_71], %346 {strides = array<i32>} : memref<8x1xf32, #tpu.memory_space<vmem>>, vector<8x1xf32>,
    return
  }
}

</mosaic_0001>

<llo_original>
// kernel: sales_lstm_forward.1
$region0: #{sales_lstm_forward.1}
  #allocation0 [shape = 'u32[]', space=smem, size = 0x4, offset = 0x4, fixed_abs, tag = 'smem constant byte address 0x4 - core index']
  #allocation1 [shape = 'u32[144,128]{1,0:T(1,128)}', space=vmem, size = 0x12000, scoped, tag = 'internal scratch']
  #allocation2 [shape = 'f32[64,32]{1,0:T(8,128)}', space=vmem, size = 0x8000, scoped, tag = 'scratch operand']
  %s0 = inlined_call_operand.vmem [shape: bf16[64,16], index: 0, kind: input, shape index: {}]
  %s1 = inlined_call_operand.vmem [shape: f32[8,128], index: 1, kind: input, shape index: {}]
  %s2 = inlined_call_operand.vmem [shape: bf16[32,128], index: 2, kind: input, shape index: {}]
  %s3 = inlined_call_operand.vmem [shape: f32[8,128], index: 3, kind: input, shape index: {}]
  %s4 = inlined_call_operand.vmem [shape: bf16[48,128], index: 4, kind: input, shape index: {}]
  %s5 = inlined_call_operand.vmem [shape: bf16[64,128], index: 5, kind: input, shape index: {}]
  %s6 = inlined_call_operand.vmem [shape: f32[8,1], index: 6, kind: output, shape index: {}]
  %s7 = sld [smem:[#allocation0]]
  $region34: #{sales_lstm_forward.1} parent=0
    _
  %s9 = ssub.s32 1, %s7
  %s10 = scalar_select 0, %s9, %s7
  // Predicated region
  $region2: #{sales_lstm_forward.1} parent=0 // pred_check
    _
  $region3: #{sales_lstm_forward.1} parent=0 // pred_check_branch
    %12 = sbr.rel (0) target = $region5
  $region4: #{sales_lstm_forward.1} parent=0 // pred_region
    _
  $region5: #{sales_lstm_forward.1} parent=0 // pred_fallthru
    _
  // Predicated region
  $region6: #{sales_lstm_forward.1} parent=0 // pred_check
    _
  $region7: #{sales_lstm_forward.1} parent=0 // pred_check_branch
    %14 = sbr.rel (0) target = $region9
  $region8: #{sales_lstm_forward.1} parent=0 // pred_region
    _
  $region9: #{sales_lstm_forward.1} parent=0 // pred_fallthru
    _
  // Predicated region
  $region10: #{sales_lstm_forward.1} parent=0 // pred_check
    _
  $region11: #{sales_lstm_forward.1} parent=0 // pred_check_branch
    %16 = sbr.rel (0) target = $region13
  $region12: #{sales_lstm_forward.1} parent=0 // pred_region
    _
  $region13: #{sales_lstm_forward.1} parent=0 // pred_fallthru
    _
  // Predicated region
  $region14: #{sales_lstm_forward.1} parent=0 // pred_check
    _
  $region15: #{sales_lstm_forward.1} parent=0 // pred_check_branch
    %18 = sbr.rel (0) target = $region17
  $region16: #{sales_lstm_forward.1} parent=0 // pred_region
    _
  $region17: #{sales_lstm_forward.1} parent=0 // pred_fallthru
    _
  // Predicated region
  $region18: #{sales_lstm_forward.1} parent=0 // pred_check
    _
  $region19: #{sales_lstm_forward.1} parent=0 // pred_check_branch
    %20 = sbr.rel (0) target = $region21
  $region20: #{sales_lstm_forward.1} parent=0 // pred_region
    _
  $region21: #{sales_lstm_forward.1} parent=0 // pred_fallthru
    _
  // Predicated region
  $region22: #{sales_lstm_forward.1} parent=0 // pred_check
    _
  $region23: #{sales_lstm_forward.1} parent=0 // pred_check_branch
    %22 = sbr.rel (0) target = $region25
  $region24: #{sales_lstm_forward.1} parent=0 // pred_region
    _
  $region25: #{sales_lstm_forward.1} parent=0 // pred_fallthru
    _
  %v24 = vld [vmem:[%s0] sm:$0xf]
  %v25 = vld [vmem:[%s0 + $0x4] sm:$0xf]
  %v26 = vld [vmem:[%s0 + $0x8] sm:$0xf]
  %v27 = vld [vmem:[%s0 + $0xc] sm:$0xf]
  %v28 = vld [vmem:[%s0 + $0x10] sm:$0xf]
  %v29 = vld [vmem:[%s0 + $0x14] sm:$0xf]
  %v30 = vld [vmem:[%s0 + $0x18] sm:$0xf]
  %v31 = vld [vmem:[%s0 + $0x1c] sm:$0xf]
  %v32 = vld [vmem:[%s4] sm:$0xf]
  %v33 = vld [vmem:[%s4 + $0x4] sm:$0xf]
  %v34 = vld [vmem:[%s4 + $0x8] sm:$0xf]
  %v35 = vld [vmem:[%s4 + $0xc] sm:$0xf]
  %v36 = vld [vmem:[%s4 + $0x10] sm:$0xf]
  %v37 = vld [vmem:[%s4 + $0x14] sm:$0xf]
  %v38 = vld [vmem:[%s1] sm:$0x1]
  %v39 = vlaneseq
  %v40 = vshrl.u32 %v39, 7
  %v41 = vsub.s32 0, %v40
  %v42 = vrot.slane %v38, %v41
  %v51 = vunpack.c.l.b16 %v24
  %v52 = vunpack.c.l.b16 %v25
  %v53 = vunpack.c.l.b16 %v26
  %v54 = vunpack.c.l.b16 %v27
  %v55 = vunpack.c.l.b16 %v28
  %v56 = vunpack.c.l.b16 %v29
  %v57 = vunpack.c.l.b16 %v30
  %v58 = vunpack.c.l.b16 %v31
  %v59 = vpack.c.b16 %v52, %v51
  %v60 = vpack.c.b16 %v54, %v53
  %v61 = vpack.c.b16 %v56, %v55
  %v62 = vpack.c.b16 %v58, %v57
  %v65 = vunpack.c.l.b16 %v32
  %v66 = vunpack.c.l.b16 %v33
  %v67 = vpack.c.b16 %v66, %v65
  %vm69 = vcmask 130048
  %v71 = vsel %vm69, %v59, 0
  %v74 = vsel %vm69, %v60, 0
  %v77 = vsel %vm69, %v61, 0
  %v80 = vsel %vm69, %v62, 0
  %82 = vmatprep.subr.bf16.mxu0 0
  %83 = vmatpush1.bf16.msra.mxu0 %v67
  %84 = vmatprep.subr.bf16.mxu0 0
  %85 = vmatpush1.bf16.msra.mxu0 0
  %86 = vmatprep.subr.bf16.mxu0 0
  %87 = vmatpush1.bf16.msra.mxu0 0
  %88 = vmatprep.subr.bf16.mxu0 0
  %89 = vmatpush1.bf16.msra.mxu0 0
  %90 = vmatprep.subr.bf16.mxu0 0
  %91 = vmatpush1.bf16.msra.mxu0 0
  %92 = vmatprep.subr.bf16.mxu0 0
  %93 = vmatpush1.bf16.msra.mxu0 0
  %94 = vmatprep.subr.bf16.mxu0 0
  %95 = vmatpush1.bf16.msra.mxu0 0
  %96 = vmatprep.subr.bf16.mxu0 0
  %97 = vmatpush1.bf16.msra.mxu0 0
  %98 = vmatprep.subr.bf16.mxu0 0
  %99 = vmatpush1.bf16.msra.mxu0 0
  %100 = vmatprep.subr.bf16.mxu0 0
  %101 = vmatpush1.bf16.msra.mxu0 0
  %102 = vmatprep.subr.bf16.mxu0 0
  %103 = vmatpush1.bf16.msra.mxu0 0
  %104 = vmatprep.subr.bf16.mxu0 0
  %105 = vmatpush1.bf16.msra.mxu0 0
  %106 = vmatprep.subr.bf16.mxu0 0
  %107 = vmatpush1.bf16.msra.mxu0 0
  %108 = vmatprep.subr.bf16.mxu0 0
  %109 = vmatpush1.bf16.msra.mxu0 0
  %110 = vmatprep.subr.bf16.mxu0 0
  %111 = vmatpush1.bf16.msra.mxu0 0
  %112 = vmatprep.subr.bf16.mxu0 0
  %113 = vmatpush1.bf16.msra.mxu0 0
  %114 = vmatprep.mubr.bf16.mxu0 0
  %115 = vmatmul.mubr.bf16.gmra.mrb[0].mxu0 %v71
  %v116 = vpop.f32.mrb[0].mxu0
  %v117 = vadd.f32 %v42, %v116
  %v118 = vpop.f32.mrb[0].mxu0
  %v119 = vpop.f32.mrb[0].mxu0
  %v120 = vadd.f32 %v42, %v119
  %v121 = vpop.f32.mrb[0].mxu0
  %122 = vmatprep.mubr.bf16.mxu0 0
  %123 = vmatmul.mubr.bf16.gmra.mrb[0].mxu0 %v74
  %v124 = vpop.f32.mrb[0].mxu0
  %v125 = vadd.f32 %v42, %v124
  %v126 = vpop.f32.mrb[0].mxu0
  %v127 = vpop.f32.mrb[0].mxu0
  %v128 = vadd.f32 %v42, %v127
  %v129 = vpop.f32.mrb[0].mxu0
  %130 = vmatprep.mubr.bf16.mxu0 0
  %131 = vmatmul.mubr.bf16.gmra.mrb[0].mxu0 %v77
  %v132 = vpop.f32.mrb[0].mxu0
  %v133 = vadd.f32 %v42, %v132
  %v134 = vpop.f32.mrb[0].mxu0
  %v135 = vpop.f32.mrb[0].mxu0
  %v136 = vadd.f32 %v42, %v135
  %v137 = vpop.f32.mrb[0].mxu0
  %138 = vmatprep.mubr.bf16.mxu0 0
  %139 = vmatmul.mubr.bf16.gmra.mrb[0].mxu0 %v80
  %v140 = vpop.f32.mrb[0].mxu0
  %v141 = vadd.f32 %v42, %v140
  %v142 = vpop.f32.mrb[0].mxu0
  %v143 = vpop.f32.mrb[0].mxu0
  %v144 = vadd.f32 %v42, %v143
  %v145 = vpop.f32.mrb[0].mxu0
  %146 = vdwg.mxu0
  %v151 = vunpack.c.l.b16 %v34
  %v152 = vunpack.c.l.b16 %v35
  %v153 = vunpack.c.l.b16 %v36
  %v154 = vunpack.c.l.b16 %v37
  %v155 = vpack.c.b16 %v152, %v151
  %v156 = vpack.c.b16 %v154, %v153
  %vm159 = vcmask 261120
  %v161 = vsel %vm159, 0, 0
  %163 = vmatprep.subr.bf16.mxu0 0
  %164 = vmatpush1.bf16.msra.mxu0 %v155
  %165 = vmatprep.subr.bf16.mxu0 0
  %166 = vmatpush1.bf16.msra.mxu0 %v156
  %167 = vmatprep.subr.bf16.mxu0 0
  %168 = vmatpush1.bf16.msra.mxu0 0
  %169 = vmatprep.subr.bf16.mxu0 0
  %170 = vmatpush1.bf16.msra.mxu0 0
  %171 = vmatprep.subr.bf16.mxu0 0
  %172 = vmatpush1.bf16.msra.mxu0 0
  %173 = vmatprep.subr.bf16.mxu0 0
  %174 = vmatpush1.bf16.msra.mxu0 0
  %175 = vmatprep.subr.bf16.mxu0 0
  %176 = vmatpush1.bf16.msra.mxu0 0
  %177 = vmatprep.subr.bf16.mxu0 0
  %178 = vmatpush1.bf16.msra.mxu0 0
  %179 = vmatprep.subr.bf16.mxu0 0
  %180 = vmatpush1.bf16.msra.mxu0 0
  %181 = vmatprep.subr.bf16.mxu0 0
  %182 = vmatpush1.bf16.msra.mxu0 0
  %183 = vmatprep.subr.bf16.mxu0 0
  %184 = vmatpush1.bf16.msra.mxu0 0
  %185 = vmatprep.subr.bf16.mxu0 0
  %186 = vmatpush1.bf16.msra.mxu0 0
  %187 = vmatprep.subr.bf16.mxu0 0
  %188 = vmatpush1.bf16.msra.mxu0 0
  %189 = vmatprep.subr.bf16.mxu0 0
  %190 = vmatpush1.bf16.msra.mxu0 0
  %191 = vmatprep.subr.bf16.mxu0 0
  %192 = vmatpush1.bf16.msra.mxu0 0
  %193 = vmatprep.subr.bf16.mxu0 0
  %194 = vmatpush1.bf16.msra.mxu0 0
  %195 = vmatprep.mubr.bf16.mxu0 0
  %196 = vmatmul.mubr.bf16.gmra.mrb[0].mxu0 %v161
  %v197 = vpop.f32.mrb[0].mxu0
  %v198 = vadd.f32 0.0, %v197
  %v199 = vpop.f32.mrb[0].mxu0
  %v200 = vpop.f32.mrb[0].mxu0
  %v201 = vpop.f32.mrb[0].mxu0
  %202 = vdwg.mxu0
  %v203 = vadd.f32 %v117, %v198
  %v204 = vxor.u32 %v203, 2147483648
  %v205 = vmul.f32 %v204, 1.442695
  %v206 = vpow.pop %v205
  %v207 = vadd.f32 %v206, 1.0
  %v208 = vrcp.pop %v207
  %v209 = vmul.f32 1.0, %v208
  %v210 = vtanh.pop %v203
  %v211 = vmul.f32 %v209, 0.0
  %213 = vrot.lane.b32.xlu0 %v210, 64
  %v214 = vpop.permute.xlu0 %213
  %v216 = vmul.f32 %v209, %v214
  %218 = vrot.lane.b32.xlu0 %v216, 32
  %v219 = vpop.permute.xlu0 %218
  %v221 = vadd.f32 %v211, %v219
  %v222 = vtanh.pop %v221
  %224 = vrot.lane.b32.xlu0 %v222, 64
  %v225 = vpop.permute.xlu0 %224
  %v227 = vmul.f32 %v209, %v225
  %229 = vrot.lane.b32.xlu0 %v227, 32
  %v230 = vpop.permute.xlu0 %229
  %232 = vst.msk [vmem:[#allocation2] sm:$0xff] %vm159, %v230
  %v233 = vpack.c.bf16 %v227, %v227
  %235 = vrot.lane.b32.xlu0 %v233, 32
  %v236 = vpop.permute.xlu0 %235
  %v238 = vsel %vm159, %v236, 0
  %240 = vmatprep.subr.bf16.mxu0 0
  %241 = vmatpush1.bf16.msra.mxu0 %v155
  %242 = vmatprep.subr.bf16.mxu0 0
  %243 = vmatpush1.bf16.msra.mxu0 %v156
  %244 = vmatprep.subr.bf16.mxu0 0
  %245 = vmatpush1.bf16.msra.mxu0 0
  %246 = vmatprep.subr.bf16.mxu0 0
  %247 = vmatpush1.bf16.msra.mxu0 0
  %248 = vmatprep.subr.bf16.mxu0 0
  %249 = vmatpush1.bf16.msra.mxu0 0
  %250 = vmatprep.subr.bf16.mxu0 0
  %251 = vmatpush1.bf16.msra.mxu0 0
  %252 = vmatprep.subr.bf16.mxu0 0
  %253 = vmatpush1.bf16.msra.mxu0 0
  %254 = vmatprep.subr.bf16.mxu0 0
  %255 = vmatpush1.bf16.msra.mxu0 0
  %256 = vmatprep.subr.bf16.mxu0 0
  %257 = vmatpush1.bf16.msra.mxu0 0
  %258 = vmatprep.subr.bf16.mxu0 0
  %259 = vmatpush1.bf16.msra.mxu0 0
  %260 = vmatprep.subr.bf16.mxu0 0
  %261 = vmatpush1.bf16.msra.mxu0 0
  %262 = vmatprep.subr.bf16.mxu0 0
  %263 = vmatpush1.bf16.msra.mxu0 0
  %264 = vmatprep.subr.bf16.mxu0 0
  %265 = vmatpush1.bf16.msra.mxu0 0
  %266 = vmatprep.subr.bf16.mxu0 0
  %267 = vmatpush1.bf16.msra.mxu0 0
  %268 = vmatprep.subr.bf16.mxu0 0
  %269 = vmatpush1.bf16.msra.mxu0 0
  %270 = vmatprep.subr.bf16.mxu0 0
  %271 = vmatpush1.bf16.msra.mxu0 0
  %272 = vmatprep.mubr.bf16.mxu0 0
  %273 = vmatmul.mubr.bf16.gmra.mrb[0].mxu0 %v238
  %v274 = vpop.f32.mrb[0].mxu0
  %v275 = vadd.f32 0.0, %v274
  %v276 = vpop.f32.mrb[0].mxu0
  %v277 = vpop.f32.mrb[0].mxu0
  %v278 = vpop.f32.mrb[0].mxu0
  %279 = vdwg.mxu0
  %v280 = vadd.f32 %v120, %v275
  %v281 = vxor.u32 %v280, 2147483648
  %v282 = vmul.f32 %v281, 1.442695
  %v283 = vpow.pop %v282
  %v284 = vadd.f32 %v283, 1.0
  %v285 = vrcp.pop %v284
  %v286 = vmul.f32 1.0, %v285
  %v287 = vtanh.pop %v280
  %v288 = vmul.f32 %v286, %v221
  %290 = vrot.lane.b32.xlu0 %v287, 64
  %v291 = vpop.permute.xlu0 %290
  %v293 = vmul.f32 %v286, %v291
  %295 = vrot.lane.b32.xlu0 %v293, 32
  %v296 = vpop.permute.xlu0 %295
  %v298 = vadd.f32 %v288, %v296
  %v299 = vtanh.pop %v298
  %301 = vrot.lane.b32.xlu0 %v299, 64
  %v302 = vpop.permute.xlu0 %301
  %v304 = vmul.f32 %v286, %v302
  %306 = vrot.lane.b32.xlu0 %v304, 32
  %v307 = vpop.permute.xlu0 %306
  %309 = vst.msk [vmem:[#allocation2 + $0x8] sm:$0xff] %vm159, %v307
  %v310 = vpack.c.bf16 %v304, %v304
  %312 = vrot.lane.b32.xlu0 %v310, 32
  %v313 = vpop.permute.xlu0 %312
  %v315 = vsel %vm159, %v313, 0
  %317 = vmatprep.subr.bf16.mxu0 0
  %318 = vmatpush1.bf16.msra.mxu0 %v155
  %319 = vmatprep.subr.bf16.mxu0 0
  %320 = vmatpush1.bf16.msra.mxu0 %v156
  %321 = vmatprep.subr.bf16.mxu0 0
  %322 = vmatpush1.bf16.msra.mxu0 0
  %323 = vmatprep.subr.bf16.mxu0 0
  %324 = vmatpush1.bf16.msra.mxu0 0
  %325 = vmatprep.subr.bf16.mxu0 0
  %326 = vmatpush1.bf16.msra.mxu0 0
  %327 = vmatprep.subr.bf16.mxu0 0
  %328 = vmatpush1.bf16.msra.mxu0 0
  %329 = vmatprep.subr.bf16.mxu0 0
  %330 = vmatpush1.bf16.msra.mxu0 0
  %331 = vmatprep.subr.bf16.mxu0 0
  %332 = vmatpush1.bf16.msra.mxu0 0
  %333 = vmatprep.subr.bf16.mxu0 0
  %334 = vmatpush1.bf16.msra.mxu0 0
  %335 = vmatprep.subr.bf16.mxu0 0
  %336 = vmatpush1.bf16.msra.mxu0 0
  %337 = vmatprep.subr.bf16.mxu0 0
  %338 = vmatpush1.bf16.msra.mxu0 0
  %339 = vmatprep.subr.bf16.mxu0 0
  %340 = vmatpush1.bf16.msra.mxu0 0
  %341 = vmatprep.subr.bf16.mxu0 0
  %342 = vmatpush1.bf16.msra.mxu0 0
  %343 = vmatprep.subr.bf16.mxu0 0
  %344 = vmatpush1.bf16.msra.mxu0 0
  %345 = vmatprep.subr.bf16.mxu0 0
  %346 = vmatpush1.bf16.msra.mxu0 0
  %347 = vmatprep.subr.bf16.mxu0 0
  %348 = vmatpush1.bf16.msra.mxu0 0
  %349 = vmatprep.mubr.bf16.mxu0 0
  %350 = vmatmul.mubr.bf16.gmra.mrb[0].mxu0 %v315
  %v351 = vpop.f32.mrb[0].mxu0
  %v352 = vadd.f32 0.0, %v351
  %v353 = vpop.f32.mrb[0].mxu0
  %v354 = vpop.f32.mrb[0].mxu0
  %v355 = vpop.f32.mrb[0].mxu0
  %356 = vdwg.mxu0
  %v357 = vadd.f32 %v125, %v352
  %v358 = vxor.u32 %v357, 2147483648
  %v359 = vmul.f32 %v358, 1.442695
  %v360 = vpow.pop %v359
  %v361 = vadd.f32 %v360, 1.0
  %v362 = vrcp.pop %v361
  %v363 = vmul.f32 1.0, %v362
  %v364 = vtanh.pop %v357
  %v365 = vmul.f32 %v363, %v298
  %367 = vrot.lane.b32.xlu0 %v364, 64
  %v368 = vpop.permute.xlu0 %367
  %v370 = vmul.f32 %v363, %v368
  %372 = vrot.lane.b32.xlu0 %v370, 32
  %v373 = vpop.permute.xlu0 %372
  %v375 = vadd.f32 %v365, %v373
  %v376 = vtanh.pop %v375
  %378 = vrot.lane.b32.xlu0 %v376, 64
  %v379 = vpop.permute.xlu0 %378
  %v381 = vmul.f32 %v363, %v379
  %383 = vrot.lane.b32.xlu0 %v381, 32
  %v384 = vpop.permute.xlu0 %383
  %386 = vst.msk [vmem:[#allocation2 + $0x10] sm:$0xff] %vm159, %v384
  %v387 = vpack.c.bf16 %v381, %v381
  %389 = vrot.lane.b32.xlu0 %v387, 32
  %v390 = vpop.permute.xlu0 %389
  %v392 = vsel %vm159, %v390, 0
  %394 = vmatprep.subr.bf16.mxu0 0
  %395 = vmatpush1.bf16.msra.mxu0 %v155
  %396 = vmatprep.subr.bf16.mxu0 0
  %397 = vmatpush1.bf16.msra.mxu0 %v156
  %398 = vmatprep.subr.bf16.mxu0 0
  %399 = vmatpush1.bf16.msra.mxu0 0
  %400 = vmatprep.subr.bf16.mxu0 0
  %401 = vmatpush1.bf16.msra.mxu0 0
  %402 = vmatprep.subr.bf16.mxu0 0
  %403 = vmatpush1.bf16.msra.mxu0 0
  %404 = vmatprep.subr.bf16.mxu0 0
  %405 = vmatpush1.bf16.msra.mxu0 0
  %406 = vmatprep.subr.bf16.mxu0 0
  %407 = vmatpush1.bf16.msra.mxu0 0
  %408 = vmatprep.subr.bf16.mxu0 0
  %409 = vmatpush1.bf16.msra.mxu0 0
  %410 = vmatprep.subr.bf16.mxu0 0
  %411 = vmatpush1.bf16.msra.mxu0 0
  %412 = vmatprep.subr.bf16.mxu0 0
  %413 = vmatpush1.bf16.msra.mxu0 0
  %414 = vmatprep.subr.bf16.mxu0 0
  %415 = vmatpush1.bf16.msra.mxu0 0
  %416 = vmatprep.subr.bf16.mxu0 0
  %417 = vmatpush1.bf16.msra.mxu0 0
  %418 = vmatprep.subr.bf16.mxu0 0
  %419 = vmatpush1.bf16.msra.mxu0 0
  %420 = vmatprep.subr.bf16.mxu0 0
  %421 = vmatpush1.bf16.msra.mxu0 0
  %422 = vmatprep.subr.bf16.mxu0 0
  %423 = vmatpush1.bf16.msra.mxu0 0
  %424 = vmatprep.subr.bf16.mxu0 0
  %425 = vmatpush1.bf16.msra.mxu0 0
  %426 = vmatprep.mubr.bf16.mxu0 0
  %427 = vmatmul.mubr.bf16.gmra.mrb[0].mxu0 %v392
  %v428 = vpop.f32.mrb[0].mxu0
  %v429 = vadd.f32 0.0, %v428
  %v430 = vpop.f32.mrb[0].mxu0
  %v431 = vpop.f32.mrb[0].mxu0
  %v432 = vpop.f32.mrb[0].mxu0
  %433 = vdwg.mxu0
  %v434 = vadd.f32 %v128, %v429
  %v435 = vxor.u32 %v434, 2147483648
  %v436 = vmul.f32 %v435, 1.442695
  %v437 = vpow.pop %v436
  %v438 = vadd.f32 %v437, 1.0
  %v439 = vrcp.pop %v438
  %v440 = vmul.f32 1.0, %v439
  %v441 = vtanh.pop %v434
  %v442 = vmul.f32 %v440, %v375
  %444 = vrot.lane.b32.xlu0 %v441, 64
  %v445 = vpop.permute.xlu0 %444
  %v447 = vmul.f32 %v440, %v445
  %449 = vrot.lane.b32.xlu0 %v447, 32
  %v450 = vpop.permute.xlu0 %449
  %v452 = vadd.f32 %v442, %v450
  %v453 = vtanh.pop %v452
  %455 = vrot.lane.b32.xlu0 %v453, 64
  %v456 = vpop.permute.xlu0 %455
  %v458 = vmul.f32 %v440, %v456
  %460 = vrot.lane.b32.xlu0 %v458, 32
  %v461 = vpop.permute.xlu0 %460
  %463 = vst.msk [vmem:[#allocation2 + $0x18] sm:$0xff] %vm159, %v461
  %v464 = vpack.c.bf16 %v458, %v458
  %466 = vrot.lane.b32.xlu0 %v464, 32
  %v467 = vpop.permute.xlu0 %466
  %v469 = vsel %vm159, %v467, 0
  %471 = vmatprep.subr.bf16.mxu0 0
  %472 = vmatpush1.bf16.msra.mxu0 %v155
  %473 = vmatprep.subr.bf16.mxu0 0
  %474 = vmatpush1.bf16.msra.mxu0 %v156
  %475 = vmatprep.subr.bf16.mxu0 0
  %476 = vmatpush1.bf16.msra.mxu0 0
  %477 = vmatprep.subr.bf16.mxu0 0
  %478 = vmatpush1.bf16.msra.mxu0 0
  %479 = vmatprep.subr.bf16.mxu0 0
  %480 = vmatpush1.bf16.msra.mxu0 0
  %481 = vmatprep.subr.bf16.mxu0 0
  %482 = vmatpush1.bf16.msra.mxu0 0
  %483 = vmatprep.subr.bf16.mxu0 0
  %484 = vmatpush1.bf16.msra.mxu0 0
  %485 = vmatprep.subr.bf16.mxu0 0
  %486 = vmatpush1.bf16.msra.mxu0 0
  %487 = vmatprep.subr.bf16.mxu0 0
  %488 = vmatpush1.bf16.msra.mxu0 0
  %489 = vmatprep.subr.bf16.mxu0 0
  %490 = vmatpush1.bf16.msra.mxu0 0
  %491 = vmatprep.subr.bf16.mxu0 0
  %492 = vmatpush1.bf16.msra.mxu0 0
  %493 = vmatprep.subr.bf16.mxu0 0
  %494 = vmatpush1.bf16.msra.mxu0 0
  %495 = vmatprep.subr.bf16.mxu0 0
  %496 = vmatpush1.bf16.msra.mxu0 0
  %497 = vmatprep.subr.bf16.mxu0 0
  %498 = vmatpush1.bf16.msra.mxu0 0
  %499 = vmatprep.subr.bf16.mxu0 0
  %500 = vmatpush1.bf16.msra.mxu0 0
  %501 = vmatprep.subr.bf16.mxu0 0
  %502 = vmatpush1.bf16.msra.mxu0 0
  %503 = vmatprep.mubr.bf16.mxu0 0
  %504 = vmatmul.mubr.bf16.gmra.mrb[0].mxu0 %v469
  %v505 = vpop.f32.mrb[0].mxu0
  %v506 = vadd.f32 0.0, %v505
  %v507 = vpop.f32.mrb[0].mxu0
  %v508 = vpop.f32.mrb[0].mxu0
  %v509 = vpop.f32.mrb[0].mxu0
  %510 = vdwg.mxu0
  %v511 = vadd.f32 %v133, %v506
  %v512 = vxor.u32 %v511, 2147483648
  %v513 = vmul.f32 %v512, 1.442695
  %v514 = vpow.pop %v513
  %v515 = vadd.f32 %v514, 1.0
  %v516 = vrcp.pop %v515
  %v517 = vmul.f32 1.0, %v516
  %v518 = vtanh.pop %v511
  %v519 = vmul.f32 %v517, %v452
  %521 = vrot.lane.b32.xlu0 %v518, 64
  %v522 = vpop.permute.xlu0 %521
  %v524 = vmul.f32 %v517, %v522
  %526 = vrot.lane.b32.xlu0 %v524, 32
  %v527 = vpop.permute.xlu0 %526
  %v529 = vadd.f32 %v519, %v527
  %v530 = vtanh.pop %v529
  %532 = vrot.lane.b32.xlu0 %v530, 64
  %v533 = vpop.permute.xlu0 %532
  %v535 = vmul.f32 %v517, %v533
  %537 = vrot.lane.b32.xlu0 %v535, 32
  %v538 = vpop.permute.xlu0 %537
  %540 = vst.msk [vmem:[#allocation2 + $0x20] sm:$0xff] %vm159, %v538
  %v541 = vpack.c.bf16 %v535, %v535
  %543 = vrot.lane.b32.xlu0 %v541, 32
  %v544 = vpop.permute.xlu0 %543
  %v546 = vsel %vm159, %v544, 0
  %548 = vmatprep.subr.bf16.mxu0 0
  %549 = vmatpush1.bf16.msra.mxu0 %v155
  %550 = vmatprep.subr.bf16.mxu0 0
  %551 = vmatpush1.bf16.msra.mxu0 %v156
  %552 = vmatprep.subr.bf16.mxu0 0
  %553 = vmatpush1.bf16.msra.mxu0 0
  %554 = vmatprep.subr.bf16.mxu0 0
  %555 = vmatpush1.bf16.msra.mxu0 0
  %556 = vmatprep.subr.bf16.mxu0 0
  %557 = vmatpush1.bf16.msra.mxu0 0
  %558 = vmatprep.subr.bf16.mxu0 0
  %559 = vmatpush1.bf16.msra.mxu0 0
  %560 = vmatprep.subr.bf16.mxu0 0
  %561 = vmatpush1.bf16.msra.mxu0 0
  %562 = vmatprep.subr.bf16.mxu0 0
  %563 = vmatpush1.bf16.msra.mxu0 0
  %564 = vmatprep.subr.bf16.mxu0 0
  %565 = vmatpush1.bf16.msra.mxu0 0
  %566 = vmatprep.subr.bf16.mxu0 0
  %567 = vmatpush1.bf16.msra.mxu0 0
  %568 = vmatprep.subr.bf16.mxu0 0
  %569 = vmatpush1.bf16.msra.mxu0 0
  %570 = vmatprep.subr.bf16.mxu0 0
  %571 = vmatpush1.bf16.msra.mxu0 0
  %572 = vmatprep.subr.bf16.mxu0 0
  %573 = vmatpush1.bf16.msra.mxu0 0
  %574 = vmatprep.subr.bf16.mxu0 0
  %575 = vmatpush1.bf16.msra.mxu0 0
  %576 = vmatprep.subr.bf16.mxu0 0
  %577 = vmatpush1.bf16.msra.mxu0 0
  %578 = vmatprep.subr.bf16.mxu0 0
  %579 = vmatpush1.bf16.msra.mxu0 0
  %580 = vmatprep.mubr.bf16.mxu0 0
  %581 = vmatmul.mubr.bf16.gmra.mrb[0].mxu0 %v546
  %v582 = vpop.f32.mrb[0].mxu0
  %v583 = vadd.f32 0.0, %v582
  %v584 = vpop.f32.mrb[0].mxu0
  %v585 = vpop.f32.mrb[0].mxu0
  %v586 = vpop.f32.mrb[0].mxu0
  %587 = vdwg.mxu0
  %v588 = vadd.f32 %v136, %v583
  %v589 = vxor.u32 %v588, 2147483648
  %v590 = vmul.f32 %v589, 1.442695
  %v591 = vpow.pop %v590
  %v592 = vadd.f32 %v591, 1.0
  %v593 = vrcp.pop %v592
  %v594 = vmul.f32 1.0, %v593
  %v595 = vtanh.pop %v588
  %v596 = vmul.f32 %v594, %v529
  %598 = vrot.lane.b32.xlu0 %v595, 64
  %v599 = vpop.permute.xlu0 %598
  %v601 = vmul.f32 %v594, %v599
  %603 = vrot.lane.b32.xlu0 %v601, 32
  %v604 = vpop.permute.xlu0 %603
  %v606 = vadd.f32 %v596, %v604
  %v607 = vtanh.pop %v606
  %609 = vrot.lane.b32.xlu0 %v607, 64
  %v610 = vpop.permute.xlu0 %609
  %v612 = vmul.f32 %v594, %v610
  %614 = vrot.lane.b32.xlu0 %v612, 32
  %v615 = vpop.permute.xlu0 %614
  %617 = vst.msk [vmem:[#allocation2 + $0x28] sm:$0xff] %vm159, %v615
  %v618 = vpack.c.bf16 %v612, %v612
  %620 = vrot.lane.b32.xlu0 %v618, 32
  %v621 = vpop.permute.xlu0 %620
  %v623 = vsel %vm159, %v621, 0
  %625 = vmatprep.subr.bf16.mxu0 0
  %626 = vmatpush1.bf16.msra.mxu0 %v155
  %627 = vmatprep.subr.bf16.mxu0 0
  %628 = vmatpush1.bf16.msra.mxu0 %v156
  %629 = vmatprep.subr.bf16.mxu0 0
  %630 = vmatpush1.bf16.msra.mxu0 0
  %631 = vmatprep.subr.bf16.mxu0 0
  %632 = vmatpush1.bf16.msra.mxu0 0
  %633 = vmatprep.subr.bf16.mxu0 0
  %634 = vmatpush1.bf16.msra.mxu0 0
  %635 = vmatprep.subr.bf16.mxu0 0
  %636 = vmatpush1.bf16.msra.mxu0 0
  %637 = vmatprep.subr.bf16.mxu0 0
  %638 = vmatpush1.bf16.msra.mxu0 0
  %639 = vmatprep.subr.bf16.mxu0 0
  %640 = vmatpush1.bf16.msra.mxu0 0
  %641 = vmatprep.subr.bf16.mxu0 0
  %642 = vmatpush1.bf16.msra.mxu0 0
  %643 = vmatprep.subr.bf16.mxu0 0
  %644 = vmatpush1.bf16.msra.mxu0 0
  %645 = vmatprep.subr.bf16.mxu0 0
  %646 = vmatpush1.bf16.msra.mxu0 0
  %647 = vmatprep.subr.bf16.mxu0 0
  %648 = vmatpush1.bf16.msra.mxu0 0
  %649 = vmatprep.subr.bf16.mxu0 0
  %650 = vmatpush1.bf16.msra.mxu0 0
  %651 = vmatprep.subr.bf16.mxu0 0
  %652 = vmatpush1.bf16.msra.mxu0 0
  %653 = vmatprep.subr.bf16.mxu0 0
  %654 = vmatpush1.bf16.msra.mxu0 0
  %655 = vmatprep.subr.bf16.mxu0 0
  %656 = vmatpush1.bf16.msra.mxu0 0
  %657 = vmatprep.mubr.bf16.mxu0 0
  %658 = vmatmul.mubr.bf16.gmra.mrb[0].mxu0 %v623
  %v659 = vpop.f32.mrb[0].mxu0
  %v660 = vadd.f32 0.0, %v659
  %v661 = vpop.f32.mrb[0].mxu0
  %v662 = vpop.f32.mrb[0].mxu0
  %v663 = vpop.f32.mrb[0].mxu0
  %664 = vdwg.mxu0
  %v665 = vadd.f32 %v141, %v660
  %v666 = vxor.u32 %v665, 2147483648
  %v667 = vmul.f32 %v666, 1.442695
  %v668 = vpow.pop %v667
  %v669 = vadd.f32 %v668, 1.0
  %v670 = vrcp.pop %v669
  %v671 = vmul.f32 1.0, %v670
  %v672 = vtanh.pop %v665
  %v673 = vmul.f32 %v671, %v606
  %675 = vrot.lane.b32.xlu0 %v672, 64
  %v676 = vpop.permute.xlu0 %675
  %v678 = vmul.f32 %v671, %v676
  %680 = vrot.lane.b32.xlu0 %v678, 32
  %v681 = vpop.permute.xlu0 %680
  %v683 = vadd.f32 %v673, %v681
  %v684 = vtanh.pop %v683
  %686 = vrot.lane.b32.xlu0 %v684, 64
  %v687 = vpop.permute.xlu0 %686
  %v689 = vmul.f32 %v671, %v687
  %691 = vrot.lane.b32.xlu0 %v689, 32
  %v692 = vpop.permute.xlu0 %691
  %694 = vst.msk [vmem:[#allocation2 + $0x30] sm:$0xff] %vm159, %v692
  %v695 = vpack.c.bf16 %v689, %v689
  %697 = vrot.lane.b32.xlu0 %v695, 32
  %v698 = vpop.permute.xlu0 %697
  %v700 = vsel %vm159, %v698, 0
  %702 = vmatprep.subr.bf16.mxu0 0
  %703 = vmatpush1.bf16.msra.mxu0 %v155
  %704 = vmatprep.subr.bf16.mxu0 0
  %705 = vmatpush1.bf16.msra.mxu0 %v156
  %706 = vmatprep.subr.bf16.mxu0 0
  %707 = vmatpush1.bf16.msra.mxu0 0
  %708 = vmatprep.subr.bf16.mxu0 0
  %709 = vmatpush1.bf16.msra.mxu0 0
  %710 = vmatprep.subr.bf16.mxu0 0
  %711 = vmatpush1.bf16.msra.mxu0 0
  %712 = vmatprep.subr.bf16.mxu0 0
  %713 = vmatpush1.bf16.msra.mxu0 0
  %714 = vmatprep.subr.bf16.mxu0 0
  %715 = vmatpush1.bf16.msra.mxu0 0
  %716 = vmatprep.subr.bf16.mxu0 0
  %717 = vmatpush1.bf16.msra.mxu0 0
  %718 = vmatprep.subr.bf16.mxu0 0
  %719 = vmatpush1.bf16.msra.mxu0 0
  %720 = vmatprep.subr.bf16.mxu0 0
  %721 = vmatpush1.bf16.msra.mxu0 0
  %722 = vmatprep.subr.bf16.mxu0 0
  %723 = vmatpush1.bf16.msra.mxu0 0
  %724 = vmatprep.subr.bf16.mxu0 0
  %725 = vmatpush1.bf16.msra.mxu0 0
  %726 = vmatprep.subr.bf16.mxu0 0
  %727 = vmatpush1.bf16.msra.mxu0 0
  %728 = vmatprep.subr.bf16.mxu0 0
  %729 = vmatpush1.bf16.msra.mxu0 0
  %730 = vmatprep.subr.bf16.mxu0 0
  %731 = vmatpush1.bf16.msra.mxu0 0
  %732 = vmatprep.subr.bf16.mxu0 0
  %733 = vmatpush1.bf16.msra.mxu0 0
  %734 = vmatprep.mubr.bf16.mxu0 0
  %735 = vmatmul.mubr.bf16.gmra.mrb[0].mxu0 %v700
  %v736 = vpop.f32.mrb[0].mxu0
  %v737 = vadd.f32 0.0, %v736
  %v738 = vpop.f32.mrb[0].mxu0
  %v739 = vpop.f32.mrb[0].mxu0
  %v740 = vpop.f32.mrb[0].mxu0
  %741 = vdwg.mxu0
  %v742 = vadd.f32 %v144, %v737
  %v743 = vxor.u32 %v742, 2147483648
  %v744 = vmul.f32 %v743, 1.442695
  %v745 = vpow.pop %v744
  %v746 = vadd.f32 %v745, 1.0
  %v747 = vrcp.pop %v746
  %v748 = vmul.f32 1.0, %v747
  %v749 = vtanh.pop %v742
  %v750 = vmul.f32 %v748, %v683
  %752 = vrot.lane.b32.xlu0 %v749, 64
  %v753 = vpop.permute.xlu0 %752
  %v755 = vmul.f32 %v748, %v753
  %757 = vrot.lane.b32.xlu0 %v755, 32
  %v758 = vpop.permute.xlu0 %757
  %v760 = vadd.f32 %v750, %v758
  %v761 = vtanh.pop %v760
  %763 = vrot.lane.b32.xlu0 %v761, 64
  %v764 = vpop.permute.xlu0 %763
  %v766 = vmul.f32 %v748, %v764
  %768 = vrot.lane.b32.xlu0 %v766, 32
  %v769 = vpop.permute.xlu0 %768
  %771 = vst.msk [vmem:[#allocation2 + $0x38] sm:$0xff] %vm159, %v769
  %v772 = vld [vmem:[#allocation2] sm:$0xff]
  %v773 = vld [vmem:[#allocation2 + $0x8] sm:$0xff]
  %v774 = vld [vmem:[#allocation2 + $0x10] sm:$0xff]
  %v775 = vld [vmem:[#allocation2 + $0x18] sm:$0xff]
  %v776 = vld [vmem:[#allocation2 + $0x20] sm:$0xff]
  %v777 = vld [vmem:[#allocation2 + $0x28] sm:$0xff]
  %v778 = vld [vmem:[#allocation2 + $0x30] sm:$0xff]
  %v779 = vld [vmem:[#allocation2 + $0x38] sm:$0xff]
  %v780 = vpack.c.bf16 %v773, %v772
  %v781 = vpack.c.bf16 %v775, %v774
  %v782 = vpack.c.bf16 %v777, %v776
  %v783 = vpack.c.bf16 %v779, %v778
  %v784 = vld [vmem:[%s5] sm:$0xf]
  %v785 = vld [vmem:[%s5 + $0x4] sm:$0xf]
  %v786 = vld [vmem:[%s5 + $0x8] sm:$0xf]
  %v787 = vld [vmem:[%s5 + $0xc] sm:$0xf]
  %v788 = vld [vmem:[%s5 + $0x10] sm:$0xf]
  %v789 = vld [vmem:[%s5 + $0x14] sm:$0xf]
  %v790 = vld [vmem:[%s5 + $0x18] sm:$0xf]
  %v791 = vld [vmem:[%s5 + $0x1c] sm:$0xf]
  %v792 = vld [vmem:[%s1 + $0x1] sm:$0x1]
  %v793 = vlaneseq
  %v794 = vshrl.u32 %v793, 7
  %v795 = vsub.s32 0, %v794
  %v796 = vrot.slane %v792, %v795
  %v801 = vunpack.c.l.b16 %v784
  %v802 = vunpack.c.l.b16 %v785
  %v803 = vunpack.c.l.b16 %v786
  %v804 = vunpack.c.l.b16 %v787
  %v805 = vpack.c.b16 %v802, %v801
  %v806 = vpack.c.b16 %v804, %v803
  %v810 = vsel %vm159, %v780, 0
  %v813 = vsel %vm159, %v781, 0
  %v816 = vsel %vm159, %v782, 0
  %v819 = vsel %vm159, %v783, 0
  %821 = vmatprep.subr.bf16.mxu0 0
  %822 = vmatpush1.bf16.msra.mxu0 %v805
  %823 = vmatprep.subr.bf16.mxu0 0
  %824 = vmatpush1.bf16.msra.mxu0 %v806
  %825 = vmatprep.subr.bf16.mxu0 0
  %826 = vmatpush1.bf16.msra.mxu0 0
  %827 = vmatprep.subr.bf16.mxu0 0
  %828 = vmatpush1.bf16.msra.mxu0 0
  %829 = vmatprep.subr.bf16.mxu0 0
  %830 = vmatpush1.bf16.msra.mxu0 0
  %831 = vmatprep.subr.bf16.mxu0 0
  %832 = vmatpush1.bf16.msra.mxu0 0
  %833 = vmatprep.subr.bf16.mxu0 0
  %834 = vmatpush1.bf16.msra.mxu0 0
  %835 = vmatprep.subr.bf16.mxu0 0
  %836 = vmatpush1.bf16.msra.mxu0 0
  %837 = vmatprep.subr.bf16.mxu0 0
  %838 = vmatpush1.bf16.msra.mxu0 0
  %839 = vmatprep.subr.bf16.mxu0 0
  %840 = vmatpush1.bf16.msra.mxu0 0
  %841 = vmatprep.subr.bf16.mxu0 0
  %842 = vmatpush1.bf16.msra.mxu0 0
  %843 = vmatprep.subr.bf16.mxu0 0
  %844 = vmatpush1.bf16.msra.mxu0 0
  %845 = vmatprep.subr.bf16.mxu0 0
  %846 = vmatpush1.bf16.msra.mxu0 0
  %847 = vmatprep.subr.bf16.mxu0 0
  %848 = vmatpush1.bf16.msra.mxu0 0
  %849 = vmatprep.subr.bf16.mxu0 0
  %850 = vmatpush1.bf16.msra.mxu0 0
  %851 = vmatprep.subr.bf16.mxu0 0
  %852 = vmatpush1.bf16.msra.mxu0 0
  %853 = vmatprep.mubr.bf16.mxu0 0
  %854 = vmatmul.mubr.bf16.gmra.mrb[0].mxu0 %v810
  %v855 = vpop.f32.mrb[0].mxu0
  %v856 = vadd.f32 %v796, %v855
  %v857 = vpop.f32.mrb[0].mxu0
  %v858 = vpop.f32.mrb[0].mxu0
  %v859 = vadd.f32 %v796, %v858
  %v860 = vpop.f32.mrb[0].mxu0
  %861 = vmatprep.mubr.bf16.mxu0 0
  %862 = vmatmul.mubr.bf16.gmra.mrb[0].mxu0 %v813
  %v863 = vpop.f32.mrb[0].mxu0
  %v864 = vadd.f32 %v796, %v863
  %v865 = vpop.f32.mrb[0].mxu0
  %v866 = vpop.f32.mrb[0].mxu0
  %v867 = vadd.f32 %v796, %v866
  %v868 = vpop.f32.mrb[0].mxu0
  %869 = vmatprep.mubr.bf16.mxu0 0
  %870 = vmatmul.mubr.bf16.gmra.mrb[0].mxu0 %v816
  %v871 = vpop.f32.mrb[0].mxu0
  %v872 = vadd.f32 %v796, %v871
  %v873 = vpop.f32.mrb[0].mxu0
  %v874 = vpop.f32.mrb[0].mxu0
  %v875 = vadd.f32 %v796, %v874
  %v876 = vpop.f32.mrb[0].mxu0
  %877 = vmatprep.mubr.bf16.mxu0 0
  %878 = vmatmul.mubr.bf16.gmra.mrb[0].mxu0 %v819
  %v879 = vpop.f32.mrb[0].mxu0
  %v880 = vadd.f32 %v796, %v879
  %v881 = vpop.f32.mrb[0].mxu0
  %v882 = vpop.f32.mrb[0].mxu0
  %v883 = vadd.f32 %v796, %v882
  %v884 = vpop.f32.mrb[0].mxu0
  %885 = vdwg.mxu0
  %v890 = vunpack.c.l.b16 %v788
  %v891 = vunpack.c.l.b16 %v789
  %v892 = vunpack.c.l.b16 %v790
  %v893 = vunpack.c.l.b16 %v791
  %v894 = vpack.c.b16 %v891, %v890
  %v895 = vpack.c.b16 %v893, %v892
  %898 = vmatprep.subr.bf16.mxu0 0
  %899 = vmatpush1.bf16.msra.mxu0 %v894
  %900 = vmatprep.subr.bf16.mxu0 0
  %901 = vmatpush1.bf16.msra.mxu0 %v895
  %902 = vmatprep.subr.bf16.mxu0 0
  %903 = vmatpush1.bf16.msra.mxu0 0
  %904 = vmatprep.subr.bf16.mxu0 0
  %905 = vmatpush1.bf16.msra.mxu0 0
  %906 = vmatprep.subr.bf16.mxu0 0
  %907 = vmatpush1.bf16.msra.mxu0 0
  %908 = vmatprep.subr.bf16.mxu0 0
  %909 = vmatpush1.bf16.msra.mxu0 0
  %910 = vmatprep.subr.bf16.mxu0 0
  %911 = vmatpush1.bf16.msra.mxu0 0
  %912 = vmatprep.subr.bf16.mxu0 0
  %913 = vmatpush1.bf16.msra.mxu0 0
  %914 = vmatprep.subr.bf16.mxu0 0
  %915 = vmatpush1.bf16.msra.mxu0 0
  %916 = vmatprep.subr.bf16.mxu0 0
  %917 = vmatpush1.bf16.msra.mxu0 0
  %918 = vmatprep.subr.bf16.mxu0 0
  %919 = vmatpush1.bf16.msra.mxu0 0
  %920 = vmatprep.subr.bf16.mxu0 0
  %921 = vmatpush1.bf16.msra.mxu0 0
  %922 = vmatprep.subr.bf16.mxu0 0
  %923 = vmatpush1.bf16.msra.mxu0 0
  %924 = vmatprep.subr.bf16.mxu0 0
  %925 = vmatpush1.bf16.msra.mxu0 0
  %926 = vmatprep.subr.bf16.mxu0 0
  %927 = vmatpush1.bf16.msra.mxu0 0
  %928 = vmatprep.subr.bf16.mxu0 0
  %929 = vmatpush1.bf16.msra.mxu0 0
  %930 = vmatprep.mubr.bf16.mxu0 0
  %931 = vmatmul.mubr.bf16.gmra.mrb[0].mxu0 %v161
  %v932 = vpop.f32.mrb[0].mxu0
  %v933 = vadd.f32 0.0, %v932
  %v934 = vpop.f32.mrb[0].mxu0
  %v935 = vpop.f32.mrb[0].mxu0
  %v936 = vpop.f32.mrb[0].mxu0
  %937 = vdwg.mxu0
  %v938 = vadd.f32 %v856, %v933
  %v939 = vxor.u32 %v938, 2147483648
  %v940 = vmul.f32 %v939, 1.442695
  %v941 = vpow.pop %v940
  %v942 = vadd.f32 %v941, 1.0
  %v943 = vrcp.pop %v942
  %v944 = vmul.f32 1.0, %v943
  %v945 = vtanh.pop %v938
  %v946 = vmul.f32 %v944, 0.0
  %948 = vrot.lane.b32.xlu0 %v945, 64
  %v949 = vpop.permute.xlu0 %948
  %v951 = vmul.f32 %v944, %v949
  %953 = vrot.lane.b32.xlu0 %v951, 32
  %v954 = vpop.permute.xlu0 %953
  %v956 = vadd.f32 %v946, %v954
  %v957 = vtanh.pop %v956
  %959 = vrot.lane.b32.xlu0 %v957, 64
  %v960 = vpop.permute.xlu0 %959
  %v962 = vmul.f32 %v944, %v960
  %v963 = vpack.c.bf16 %v962, %v962
  %965 = vrot.lane.b32.xlu0 %v963, 32
  %v966 = vpop.permute.xlu0 %965
  %v968 = vsel %vm159, %v966, 0
  %970 = vmatprep.subr.bf16.mxu0 0
  %971 = vmatpush1.bf16.msra.mxu0 %v894
  %972 = vmatprep.subr.bf16.mxu0 0
  %973 = vmatpush1.bf16.msra.mxu0 %v895
  %974 = vmatprep.subr.bf16.mxu0 0
  %975 = vmatpush1.bf16.msra.mxu0 0
  %976 = vmatprep.subr.bf16.mxu0 0
  %977 = vmatpush1.bf16.msra.mxu0 0
  %978 = vmatprep.subr.bf16.mxu0 0
  %979 = vmatpush1.bf16.msra.mxu0 0
  %980 = vmatprep.subr.bf16.mxu0 0
  %981 = vmatpush1.bf16.msra.mxu0 0
  %982 = vmatprep.subr.bf16.mxu0 0
  %983 = vmatpush1.bf16.msra.mxu0 0
  %984 = vmatprep.subr.bf16.mxu0 0
  %985 = vmatpush1.bf16.msra.mxu0 0
  %986 = vmatprep.subr.bf16.mxu0 0
  %987 = vmatpush1.bf16.msra.mxu0 0
  %988 = vmatprep.subr.bf16.mxu0 0
  %989 = vmatpush1.bf16.msra.mxu0 0
  %990 = vmatprep.subr.bf16.mxu0 0
  %991 = vmatpush1.bf16.msra.mxu0 0
  %992 = vmatprep.subr.bf16.mxu0 0
  %993 = vmatpush1.bf16.msra.mxu0 0
  %994 = vmatprep.subr.bf16.mxu0 0
  %995 = vmatpush1.bf16.msra.mxu0 0
  %996 = vmatprep.subr.bf16.mxu0 0
  %997 = vmatpush1.bf16.msra.mxu0 0
  %998 = vmatprep.subr.bf16.mxu0 0
  %999 = vmatpush1.bf16.msra.mxu0 0
  %1000 = vmatprep.subr.bf16.mxu0 0
  %1001 = vmatpush1.bf16.msra.mxu0 0
  %1002 = vmatprep.mubr.bf16.mxu0 0
  %1003 = vmatmul.mubr.bf16.gmra.mrb[0].mxu0 %v968
  %v1004 = vpop.f32.mrb[0].mxu0
  %v1005 = vadd.f32 0.0, %v1004
  %v1006 = vpop.f32.mrb[0].mxu0
  %v1007 = vpop.f32.mrb[0].mxu0
  %v1008 = vpop.f32.mrb[0].mxu0
  %1009 = vdwg.mxu0
  %v1010 = vadd.f32 %v859, %v1005
  %v1011 = vxor.u32 %v1010, 2147483648
  %v1012 = vmul.f32 %v1011, 1.442695
  %v1013 = vpow.pop %v1012
  %v1014 = vadd.f32 %v1013, 1.0
  %v1015 = vrcp.pop %v1014
  %v1016 = vmul.f32 1.0, %v1015
  %v1017 = vtanh.pop %v1010
  %v1018 = vmul.f32 %v1016, %v956
  %1020 = vrot.lane.b32.xlu0 %v1017, 64
  %v1021 = vpop.permute.xlu0 %1020
  %v1023 = vmul.f32 %v1016, %v1021
  %1025 = vrot.lane.b32.xlu0 %v1023, 32
  %v1026 = vpop.permute.xlu0 %1025
  %v1028 = vadd.f32 %v1018, %v1026
  %v1029 = vtanh.pop %v1028
  %1031 = vrot.lane.b32.xlu0 %v1029, 64
  %v1032 = vpop.permute.xlu0 %1031
  %v1034 = vmul.f32 %v1016, %v1032
  %v1035 = vpack.c.bf16 %v1034, %v1034
  %1037 = vrot.lane.b32.xlu0 %v1035, 32
  %v1038 = vpop.permute.xlu0 %1037
  %v1040 = vsel %vm159, %v1038, 0
  %1042 = vmatprep.subr.bf16.mxu0 0
  %1043 = vmatpush1.bf16.msra.mxu0 %v894
  %1044 = vmatprep.subr.bf16.mxu0 0
  %1045 = vmatpush1.bf16.msra.mxu0 %v895
  %1046 = vmatprep.subr.bf16.mxu0 0
  %1047 = vmatpush1.bf16.msra.mxu0 0
  %1048 = vmatprep.subr.bf16.mxu0 0
  %1049 = vmatpush1.bf16.msra.mxu0 0
  %1050 = vmatprep.subr.bf16.mxu0 0
  %1051 = vmatpush1.bf16.msra.mxu0 0
  %1052 = vmatprep.subr.bf16.mxu0 0
  %1053 = vmatpush1.bf16.msra.mxu0 0
  %1054 = vmatprep.subr.bf16.mxu0 0
  %1055 = vmatpush1.bf16.msra.mxu0 0
  %1056 = vmatprep.subr.bf16.mxu0 0
  %1057 = vmatpush1.bf16.msra.mxu0 0
  %1058 = vmatprep.subr.bf16.mxu0 0
  %1059 = vmatpush1.bf16.msra.mxu0 0
  %1060 = vmatprep.subr.bf16.mxu0 0
  %1061 = vmatpush1.bf16.msra.mxu0 0
  %1062 = vmatprep.subr.bf16.mxu0 0
  %1063 = vmatpush1.bf16.msra.mxu0 0
  %1064 = vmatprep.subr.bf16.mxu0 0
  %1065 = vmatpush1.bf16.msra.mxu0 0
  %1066 = vmatprep.subr.bf16.mxu0 0
  %1067 = vmatpush1.bf16.msra.mxu0 0
  %1068 = vmatprep.subr.bf16.mxu0 0
  %1069 = vmatpush1.bf16.msra.mxu0 0
  %1070 = vmatprep.subr.bf16.mxu0 0
  %1071 = vmatpush1.bf16.msra.mxu0 0
  %1072 = vmatprep.subr.bf16.mxu0 0
  %1073 = vmatpush1.bf16.msra.mxu0 0
  %1074 = vmatprep.mubr.bf16.mxu0 0
  %1075 = vmatmul.mubr.bf16.gmra.mrb[0].mxu0 %v1040
  %v1076 = vpop.f32.mrb[0].mxu0
  %v1077 = vadd.f32 0.0, %v1076
  %v1078 = vpop.f32.mrb[0].mxu0
  %v1079 = vpop.f32.mrb[0].mxu0
  %v1080 = vpop.f32.mrb[0].mxu0
  %1081 = vdwg.mxu0
  %v1082 = vadd.f32 %v864, %v1077
  %v1083 = vxor.u32 %v1082, 2147483648
  %v1084 = vmul.f32 %v1083, 1.442695
  %v1085 = vpow.pop %v1084
  %v1086 = vadd.f32 %v1085, 1.0
  %v1087 = vrcp.pop %v1086
  %v1088 = vmul.f32 1.0, %v1087
  %v1089 = vtanh.pop %v1082
  %v1090 = vmul.f32 %v1088, %v1028
  %1092 = vrot.lane.b32.xlu0 %v1089, 64
  %v1093 = vpop.permute.xlu0 %1092
  %v1095 = vmul.f32 %v1088, %v1093
  %1097 = vrot.lane.b32.xlu0 %v1095, 32
  %v1098 = vpop.permute.xlu0 %1097
  %v1100 = vadd.f32 %v1090, %v1098
  %v1101 = vtanh.pop %v1100
  %1103 = vrot.lane.b32.xlu0 %v1101, 64
  %v1104 = vpop.permute.xlu0 %1103
  %v1106 = vmul.f32 %v1088, %v1104
  %v1107 = vpack.c.bf16 %v1106, %v1106
  %1109 = vrot.lane.b32.xlu0 %v1107, 32
  %v1110 = vpop.permute.xlu0 %1109
  %v1112 = vsel %vm159, %v1110, 0
  %1114 = vmatprep.subr.bf16.mxu0 0
  %1115 = vmatpush1.bf16.msra.mxu0 %v894
  %1116 = vmatprep.subr.bf16.mxu0 0
  %1117 = vmatpush1.bf16.msra.mxu0 %v895
  %1118 = vmatprep.subr.bf16.mxu0 0
  %1119 = vmatpush1.bf16.msra.mxu0 0
  %1120 = vmatprep.subr.bf16.mxu0 0
  %1121 = vmatpush1.bf16.msra.mxu0 0
  %1122 = vmatprep.subr.bf16.mxu0 0
  %1123 = vmatpush1.bf16.msra.mxu0 0
  %1124 = vmatprep.subr.bf16.mxu0 0
  %1125 = vmatpush1.bf16.msra.mxu0 0
  %1126 = vmatprep.subr.bf16.mxu0 0
  %1127 = vmatpush1.bf16.msra.mxu0 0
  %1128 = vmatprep.subr.bf16.mxu0 0
  %1129 = vmatpush1.bf16.msra.mxu0 0
  %1130 = vmatprep.subr.bf16.mxu0 0
  %1131 = vmatpush1.bf16.msra.mxu0 0
  %1132 = vmatprep.subr.bf16.mxu0 0
  %1133 = vmatpush1.bf16.msra.mxu0 0
  %1134 = vmatprep.subr.bf16.mxu0 0
  %1135 = vmatpush1.bf16.msra.mxu0 0
  %1136 = vmatprep.subr.bf16.mxu0 0
  %1137 = vmatpush1.bf16.msra.mxu0 0
  %1138 = vmatprep.subr.bf16.mxu0 0
  %1139 = vmatpush1.bf16.msra.mxu0 0
  %1140 = vmatprep.subr.bf16.mxu0 0
  %1141 = vmatpush1.bf16.msra.mxu0 0
  %1142 = vmatprep.subr.bf16.mxu0 0
  %1143 = vmatpush1.bf16.msra.mxu0 0
  %1144 = vmatprep.subr.bf16.mxu0 0
  %1145 = vmatpush1.bf16.msra.mxu0 0
  %1146 = vmatprep.mubr.bf16.mxu0 0
  %1147 = vmatmul.mubr.bf16.gmra.mrb[0].mxu0 %v1112
  %v1148 = vpop.f32.mrb[0].mxu0
  %v1149 = vadd.f32 0.0, %v1148
  %v1150 = vpop.f32.mrb[0].mxu0
  %v1151 = vpop.f32.mrb[0].mxu0
  %v1152 = vpop.f32.mrb[0].mxu0
  %1153 = vdwg.mxu0
  %v1154 = vadd.f32 %v867, %v1149
  %v1155 = vxor.u32 %v1154, 2147483648
  %v1156 = vmul.f32 %v1155, 1.442695
  %v1157 = vpow.pop %v1156
  %v1158 = vadd.f32 %v1157, 1.0
  %v1159 = vrcp.pop %v1158
  %v1160 = vmul.f32 1.0, %v1159
  %v1161 = vtanh.pop %v1154
  %v1162 = vmul.f32 %v1160, %v1100
  %1164 = vrot.lane.b32.xlu0 %v1161, 64
  %v1165 = vpop.permute.xlu0 %1164
  %v1167 = vmul.f32 %v1160, %v1165
  %1169 = vrot.lane.b32.xlu0 %v1167, 32
  %v1170 = vpop.permute.xlu0 %1169
  %v1172 = vadd.f32 %v1162, %v1170
  %v1173 = vtanh.pop %v1172
  %1175 = vrot.lane.b32.xlu0 %v1173, 64
  %v1176 = vpop.permute.xlu0 %1175
  %v1178 = vmul.f32 %v1160, %v1176
  %v1179 = vpack.c.bf16 %v1178, %v1178
  %1181 = vrot.lane.b32.xlu0 %v1179, 32
  %v1182 = vpop.permute.xlu0 %1181
  %v1184 = vsel %vm159, %v1182, 0
  %1186 = vmatprep.subr.bf16.mxu0 0
  %1187 = vmatpush1.bf16.msra.mxu0 %v894
  %1188 = vmatprep.subr.bf16.mxu0 0
  %1189 = vmatpush1.bf16.msra.mxu0 %v895
  %1190 = vmatprep.subr.bf16.mxu0 0
  %1191 = vmatpush1.bf16.msra.mxu0 0
  %1192 = vmatprep.subr.bf16.mxu0 0
  %1193 = vmatpush1.bf16.msra.mxu0 0
  %1194 = vmatprep.subr.bf16.mxu0 0
  %1195 = vmatpush1.bf16.msra.mxu0 0
  %1196 = vmatprep.subr.bf16.mxu0 0
  %1197 = vmatpush1.bf16.msra.mxu0 0
  %1198 = vmatprep.subr.bf16.mxu0 0
  %1199 = vmatpush1.bf16.msra.mxu0 0
  %1200 = vmatprep.subr.bf16.mxu0 0
  %1201 = vmatpush1.bf16.msra.mxu0 0
  %1202 = vmatprep.subr.bf16.mxu0 0
  %1203 = vmatpush1.bf16.msra.mxu0 0
  %1204 = vmatprep.subr.bf16.mxu0 0
  %1205 = vmatpush1.bf16.msra.mxu0 0
  %1206 = vmatprep.subr.bf16.mxu0 0
  %1207 = vmatpush1.bf16.msra.mxu0 0
  %1208 = vmatprep.subr.bf16.mxu0 0
  %1209 = vmatpush1.bf16.msra.mxu0 0
  %1210 = vmatprep.subr.bf16.mxu0 0
  %1211 = vmatpush1.bf16.msra.mxu0 0
  %1212 = vmatprep.subr.bf16.mxu0 0
  %1213 = vmatpush1.bf16.msra.mxu0 0
  %1214 = vmatprep.subr.bf16.mxu0 0
  %1215 = vmatpush1.bf16.msra.mxu0 0
  %1216 = vmatprep.subr.bf16.mxu0 0
  %1217 = vmatpush1.bf16.msra.mxu0 0
  %1218 = vmatprep.mubr.bf16.mxu0 0
  %1219 = vmatmul.mubr.bf16.gmra.mrb[0].mxu0 %v1184
  %v1220 = vpop.f32.mrb[0].mxu0
  %v1221 = vadd.f32 0.0, %v1220
  %v1222 = vpop.f32.mrb[0].mxu0
  %v1223 = vpop.f32.mrb[0].mxu0
  %v1224 = vpop.f32.mrb[0].mxu0
  %1225 = vdwg.mxu0
  %v1226 = vadd.f32 %v872, %v1221
  %v1227 = vxor.u32 %v1226, 2147483648
  %v1228 = vmul.f32 %v1227, 1.442695
  %v1229 = vpow.pop %v1228
  %v1230 = vadd.f32 %v1229, 1.0
  %v1231 = vrcp.pop %v1230
  %v1232 = vmul.f32 1.0, %v1231
  %v1233 = vtanh.pop %v1226
  %v1234 = vmul.f32 %v1232, %v1172
  %1236 = vrot.lane.b32.xlu0 %v1233, 64
  %v1237 = vpop.permute.xlu0 %1236
  %v1239 = vmul.f32 %v1232, %v1237
  %1241 = vrot.lane.b32.xlu0 %v1239, 32
  %v1242 = vpop.permute.xlu0 %1241
  %v1244 = vadd.f32 %v1234, %v1242
  %v1245 = vtanh.pop %v1244
  %1247 = vrot.lane.b32.xlu0 %v1245, 64
  %v1248 = vpop.permute.xlu0 %1247
  %v1250 = vmul.f32 %v1232, %v1248
  %v1251 = vpack.c.bf16 %v1250, %v1250
  %1253 = vrot.lane.b32.xlu0 %v1251, 32
  %v1254 = vpop.permute.xlu0 %1253
  %v1256 = vsel %vm159, %v1254, 0
  %1258 = vmatprep.subr.bf16.mxu0 0
  %1259 = vmatpush1.bf16.msra.mxu0 %v894
  %1260 = vmatprep.subr.bf16.mxu0 0
  %1261 = vmatpush1.bf16.msra.mxu0 %v895
  %1262 = vmatprep.subr.bf16.mxu0 0
  %1263 = vmatpush1.bf16.msra.mxu0 0
  %1264 = vmatprep.subr.bf16.mxu0 0
  %1265 = vmatpush1.bf16.msra.mxu0 0
  %1266 = vmatprep.subr.bf16.mxu0 0
  %1267 = vmatpush1.bf16.msra.mxu0 0
  %1268 = vmatprep.subr.bf16.mxu0 0
  %1269 = vmatpush1.bf16.msra.mxu0 0
  %1270 = vmatprep.subr.bf16.mxu0 0
  %1271 = vmatpush1.bf16.msra.mxu0 0
  %1272 = vmatprep.subr.bf16.mxu0 0
  %1273 = vmatpush1.bf16.msra.mxu0 0
  %1274 = vmatprep.subr.bf16.mxu0 0
  %1275 = vmatpush1.bf16.msra.mxu0 0
  %1276 = vmatprep.subr.bf16.mxu0 0
  %1277 = vmatpush1.bf16.msra.mxu0 0
  %1278 = vmatprep.subr.bf16.mxu0 0
  %1279 = vmatpush1.bf16.msra.mxu0 0
  %1280 = vmatprep.subr.bf16.mxu0 0
  %1281 = vmatpush1.bf16.msra.mxu0 0
  %1282 = vmatprep.subr.bf16.mxu0 0
  %1283 = vmatpush1.bf16.msra.mxu0 0
  %1284 = vmatprep.subr.bf16.mxu0 0
  %1285 = vmatpush1.bf16.msra.mxu0 0
  %1286 = vmatprep.subr.bf16.mxu0 0
  %1287 = vmatpush1.bf16.msra.mxu0 0
  %1288 = vmatprep.subr.bf16.mxu0 0
  %1289 = vmatpush1.bf16.msra.mxu0 0
  %1290 = vmatprep.mubr.bf16.mxu0 0
  %1291 = vmatmul.mubr.bf16.gmra.mrb[0].mxu0 %v1256
  %v1292 = vpop.f32.mrb[0].mxu0
  %v1293 = vadd.f32 0.0, %v1292
  %v1294 = vpop.f32.mrb[0].mxu0
  %v1295 = vpop.f32.mrb[0].mxu0
  %v1296 = vpop.f32.mrb[0].mxu0
  %1297 = vdwg.mxu0
  %v1298 = vadd.f32 %v875, %v1293
  %v1299 = vxor.u32 %v1298, 2147483648
  %v1300 = vmul.f32 %v1299, 1.442695
  %v1301 = vpow.pop %v1300
  %v1302 = vadd.f32 %v1301, 1.0
  %v1303 = vrcp.pop %v1302
  %v1304 = vmul.f32 1.0, %v1303
  %v1305 = vtanh.pop %v1298
  %v1306 = vmul.f32 %v1304, %v1244
  %1308 = vrot.lane.b32.xlu0 %v1305, 64
  %v1309 = vpop.permute.xlu0 %1308
  %v1311 = vmul.f32 %v1304, %v1309
  %1313 = vrot.lane.b32.xlu0 %v1311, 32
  %v1314 = vpop.permute.xlu0 %1313
  %v1316 = vadd.f32 %v1306, %v1314
  %v1317 = vtanh.pop %v1316
  %1319 = vrot.lane.b32.xlu0 %v1317, 64
  %v1320 = vpop.permute.xlu0 %1319
  %v1322 = vmul.f32 %v1304, %v1320
  %v1323 = vpack.c.bf16 %v1322, %v1322
  %1325 = vrot.lane.b32.xlu0 %v1323, 32
  %v1326 = vpop.permute.xlu0 %1325
  %v1328 = vsel %vm159, %v1326, 0
  %1330 = vmatprep.subr.bf16.mxu0 0
  %1331 = vmatpush1.bf16.msra.mxu0 %v894
  %1332 = vmatprep.subr.bf16.mxu0 0
  %1333 = vmatpush1.bf16.msra.mxu0 %v895
  %1334 = vmatprep.subr.bf16.mxu0 0
  %1335 = vmatpush1.bf16.msra.mxu0 0
  %1336 = vmatprep.subr.bf16.mxu0 0
  %1337 = vmatpush1.bf16.msra.mxu0 0
  %1338 = vmatprep.subr.bf16.mxu0 0
  %1339 = vmatpush1.bf16.msra.mxu0 0
  %1340 = vmatprep.subr.bf16.mxu0 0
  %1341 = vmatpush1.bf16.msra.mxu0 0
  %1342 = vmatprep.subr.bf16.mxu0 0
  %1343 = vmatpush1.bf16.msra.mxu0 0
  %1344 = vmatprep.subr.bf16.mxu0 0
  %1345 = vmatpush1.bf16.msra.mxu0 0
  %1346 = vmatprep.subr.bf16.mxu0 0
  %1347 = vmatpush1.bf16.msra.mxu0 0
  %1348 = vmatprep.subr.bf16.mxu0 0
  %1349 = vmatpush1.bf16.msra.mxu0 0
  %1350 = vmatprep.subr.bf16.mxu0 0
  %1351 = vmatpush1.bf16.msra.mxu0 0
  %1352 = vmatprep.subr.bf16.mxu0 0
  %1353 = vmatpush1.bf16.msra.mxu0 0
  %1354 = vmatprep.subr.bf16.mxu0 0
  %1355 = vmatpush1.bf16.msra.mxu0 0
  %1356 = vmatprep.subr.bf16.mxu0 0
  %1357 = vmatpush1.bf16.msra.mxu0 0
  %1358 = vmatprep.subr.bf16.mxu0 0
  %1359 = vmatpush1.bf16.msra.mxu0 0
  %1360 = vmatprep.subr.bf16.mxu0 0
  %1361 = vmatpush1.bf16.msra.mxu0 0
  %1362 = vmatprep.mubr.bf16.mxu0 0
  %1363 = vmatmul.mubr.bf16.gmra.mrb[0].mxu0 %v1328
  %v1364 = vpop.f32.mrb[0].mxu0
  %v1365 = vadd.f32 0.0, %v1364
  %v1366 = vpop.f32.mrb[0].mxu0
  %v1367 = vpop.f32.mrb[0].mxu0
  %v1368 = vpop.f32.mrb[0].mxu0
  %1369 = vdwg.mxu0
  %v1370 = vadd.f32 %v880, %v1365
  %v1371 = vxor.u32 %v1370, 2147483648
  %v1372 = vmul.f32 %v1371, 1.442695
  %v1373 = vpow.pop %v1372
  %v1374 = vadd.f32 %v1373, 1.0
  %v1375 = vrcp.pop %v1374
  %v1376 = vmul.f32 1.0, %v1375
  %v1377 = vtanh.pop %v1370
  %v1378 = vmul.f32 %v1376, %v1316
  %1380 = vrot.lane.b32.xlu0 %v1377, 64
  %v1381 = vpop.permute.xlu0 %1380
  %v1383 = vmul.f32 %v1376, %v1381
  %1385 = vrot.lane.b32.xlu0 %v1383, 32
  %v1386 = vpop.permute.xlu0 %1385
  %v1388 = vadd.f32 %v1378, %v1386
  %v1389 = vtanh.pop %v1388
  %1391 = vrot.lane.b32.xlu0 %v1389, 64
  %v1392 = vpop.permute.xlu0 %1391
  %v1394 = vmul.f32 %v1376, %v1392
  %v1395 = vpack.c.bf16 %v1394, %v1394
  %1397 = vrot.lane.b32.xlu0 %v1395, 32
  %v1398 = vpop.permute.xlu0 %1397
  %v1400 = vsel %vm159, %v1398, 0
  %1402 = vmatprep.subr.bf16.mxu0 0
  %1403 = vmatpush1.bf16.msra.mxu0 %v894
  %1404 = vmatprep.subr.bf16.mxu0 0
  %1405 = vmatpush1.bf16.msra.mxu0 %v895
  %1406 = vmatprep.subr.bf16.mxu0 0
  %1407 = vmatpush1.bf16.msra.mxu0 0
  %1408 = vmatprep.subr.bf16.mxu0 0
  %1409 = vmatpush1.bf16.msra.mxu0 0
  %1410 = vmatprep.subr.bf16.mxu0 0
  %1411 = vmatpush1.bf16.msra.mxu0 0
  %1412 = vmatprep.subr.bf16.mxu0 0
  %1413 = vmatpush1.bf16.msra.mxu0 0
  %1414 = vmatprep.subr.bf16.mxu0 0
  %1415 = vmatpush1.bf16.msra.mxu0 0
  %1416 = vmatprep.subr.bf16.mxu0 0
  %1417 = vmatpush1.bf16.msra.mxu0 0
  %1418 = vmatprep.subr.bf16.mxu0 0
  %1419 = vmatpush1.bf16.msra.mxu0 0
  %1420 = vmatprep.subr.bf16.mxu0 0
  %1421 = vmatpush1.bf16.msra.mxu0 0
  %1422 = vmatprep.subr.bf16.mxu0 0
  %1423 = vmatpush1.bf16.msra.mxu0 0
  %1424 = vmatprep.subr.bf16.mxu0 0
  %1425 = vmatpush1.bf16.msra.mxu0 0
  %1426 = vmatprep.subr.bf16.mxu0 0
  %1427 = vmatpush1.bf16.msra.mxu0 0
  %1428 = vmatprep.subr.bf16.mxu0 0
  %1429 = vmatpush1.bf16.msra.mxu0 0
  %1430 = vmatprep.subr.bf16.mxu0 0
  %1431 = vmatpush1.bf16.msra.mxu0 0
  %1432 = vmatprep.subr.bf16.mxu0 0
  %1433 = vmatpush1.bf16.msra.mxu0 0
  %1434 = vmatprep.mubr.bf16.mxu0 0
  %1435 = vmatmul.mubr.bf16.gmra.mrb[0].mxu0 %v1400
  %v1436 = vpop.f32.mrb[0].mxu0
  %v1437 = vadd.f32 0.0, %v1436
  %v1438 = vpop.f32.mrb[0].mxu0
  %v1439 = vpop.f32.mrb[0].mxu0
  %v1440 = vpop.f32.mrb[0].mxu0
  %1441 = vdwg.mxu0
  %v1442 = vadd.f32 %v883, %v1437
  %v1443 = vxor.u32 %v1442, 2147483648
  %v1444 = vmul.f32 %v1443, 1.442695
  %v1445 = vpow.pop %v1444
  %v1446 = vadd.f32 %v1445, 1.0
  %v1447 = vrcp.pop %v1446
  %v1448 = vmul.f32 1.0, %v1447
  %v1449 = vtanh.pop %v1442
  %v1450 = vmul.f32 %v1448, %v1388
  %1452 = vrot.lane.b32.xlu0 %v1449, 64
  %v1453 = vpop.permute.xlu0 %1452
  %v1455 = vmul.f32 %v1448, %v1453
  %1457 = vrot.lane.b32.xlu0 %v1455, 32
  %v1458 = vpop.permute.xlu0 %1457
  %v1460 = vadd.f32 %v1450, %v1458
  %v1461 = vtanh.pop %v1460
  %1463 = vrot.lane.b32.xlu0 %v1461, 64
  %v1464 = vpop.permute.xlu0 %1463
  %v1466 = vmul.f32 %v1448, %v1464
  %v1467 = vpack.c.bf16 %v1466, %v1466
  %v1468 = vld [vmem:[%s2] sm:$0xf]
  %v1469 = vld [vmem:[%s2 + $0x4] sm:$0xf]
  %v1470 = vld [vmem:[%s2 + $0x8] sm:$0xf]
  %v1471 = vld [vmem:[%s2 + $0xc] sm:$0xf]
  %v1472 = vld [vmem:[%s3] sm:$0x1]
  %v1473 = vlaneseq
  %v1474 = vshrl.u32 %v1473, 7
  %v1475 = vsub.s32 0, %v1474
  %v1476 = vrot.slane %v1472, %v1475
  %1478 = vrot.lane.b32.xlu0 %v1467, 32
  %v1479 = vpop.permute.xlu0 %1478
  %v1484 = vunpack.c.l.b16 %v1468
  %v1485 = vunpack.c.l.b16 %v1469
  %v1486 = vunpack.c.l.b16 %v1470
  %v1487 = vunpack.c.l.b16 %v1471
  %v1488 = vpack.c.b16 %v1485, %v1484
  %v1489 = vpack.c.b16 %v1487, %v1486
  %v1493 = vsel %vm159, %v1479, 0
  %1495 = vmatprep.subr.bf16.mxu0 0
  %1496 = vmatpush1.bf16.msra.mxu0 %v1488
  %1497 = vmatprep.subr.bf16.mxu0 0
  %1498 = vmatpush1.bf16.msra.mxu0 %v1489
  %1499 = vmatprep.subr.bf16.mxu0 0
  %1500 = vmatpush1.bf16.msra.mxu0 0
  %1501 = vmatprep.subr.bf16.mxu0 0
  %1502 = vmatpush1.bf16.msra.mxu0 0
  %1503 = vmatprep.subr.bf16.mxu0 0
  %1504 = vmatpush1.bf16.msra.mxu0 0
  %1505 = vmatprep.subr.bf16.mxu0 0
  %1506 = vmatpush1.bf16.msra.mxu0 0
  %1507 = vmatprep.subr.bf16.mxu0 0
  %1508 = vmatpush1.bf16.msra.mxu0 0
  %1509 = vmatprep.subr.bf16.mxu0 0
  %1510 = vmatpush1.bf16.msra.mxu0 0
  %1511 = vmatprep.subr.bf16.mxu0 0
  %1512 = vmatpush1.bf16.msra.mxu0 0
  %1513 = vmatprep.subr.bf16.mxu0 0
  %1514 = vmatpush1.bf16.msra.mxu0 0
  %1515 = vmatprep.subr.bf16.mxu0 0
  %1516 = vmatpush1.bf16.msra.mxu0 0
  %1517 = vmatprep.subr.bf16.mxu0 0
  %1518 = vmatpush1.bf16.msra.mxu0 0
  %1519 = vmatprep.subr.bf16.mxu0 0
  %1520 = vmatpush1.bf16.msra.mxu0 0
  %1521 = vmatprep.subr.bf16.mxu0 0
  %1522 = vmatpush1.bf16.msra.mxu0 0
  %1523 = vmatprep.subr.bf16.mxu0 0
  %1524 = vmatpush1.bf16.msra.mxu0 0
  %1525 = vmatprep.subr.bf16.mxu0 0
  %1526 = vmatpush1.bf16.msra.mxu0 0
  %1527 = vmatprep.mubr.bf16.mxu0 0
  %1528 = vmatmul.mubr.bf16.gmra.mrb[0].mxu0 %v1493
  %v1529 = vpop.f32.mrb[0].mxu0
  %v1530 = vadd.f32 %v1476, %v1529
  %v1531 = vpop.f32.mrb[0].mxu0
  %v1532 = vpop.f32.mrb[0].mxu0
  %v1533 = vpop.f32.mrb[0].mxu0
  %1534 = vdwg.mxu0
  %v1535 = vmax.f32 %v1530, 0.0
  %v1536 = vld [vmem:[%s3 + $0x2] sm:$0x1]
  %v1537 = vlaneseq
  %v1538 = vshrl.u32 %v1537, 7
  %v1539 = vsub.s32 0, %v1538
  %v1540 = vrot.slane %v1536, %v1539
  %v1541 = vmul.f32 %v1535, %v1540
  %1542 = vadd.xlane.f32.xlu0 %v1541
  %v1543 = vpop.xlane.xlu0 %1542
  %v1544 = vld [vmem:[%s3 + $0x1] sm:$0x1]
  %v1545 = vlaneseq
  %v1546 = vshrl.u32 %v1545, 7
  %v1547 = vsub.s32 0, %v1546
  %v1548 = vrot.slane %v1544, %v1547
  %v1549 = vadd.f32 %v1543, %v1548
  %vm1550 = vcmask 7168
  %1551 = vst.msk [vmem:[%s6] sm:$0xff] %vm1550, %v1549
  // Predicated region
  $region26: #{sales_lstm_forward.1} parent=0 // pred_check
    _
  $region27: #{sales_lstm_forward.1} parent=0 // pred_check_branch
    %1553 = sbr.rel (0) target = $region29
  $region28: #{sales_lstm_forward.1} parent=0 // pred_region
    _
  $region29: #{sales_lstm_forward.1} parent=0 // pred_fallthru
    _
  // Predicated region
  $region30: #{sales_lstm_forward.1} parent=0 // pred_check
    _
  $region31: #{sales_lstm_forward.1} parent=0 // pred_check_branch
    %1555 = sbr.rel (0) target = $region33
  $region32: #{sales_lstm_forward.1} parent=0 // pred_region
    _
  $region33: #{sales_lstm_forward.1} parent=0 // pred_fallthru
    _

</llo_original>
